<compile_context>
chip_gen: v5e
topology: v5e:2x2
jax: 0.10.0
libtpu: 0.0.40
codegen_flags: <defaults>
</compile_context>

<pallas_src>
import functools
import math

import jax
import jax.numpy as jnp
from jax import lax
from jax.experimental import pallas as pl
from jax.experimental.pallas import tpu as pltpu

# ----------------------------- "cfg" constants ------------------------------
NODE_EMB = 16     # cfg.DATASET.NODE_EMBEDDING_SIZE
EDGE_EMB = 16     # cfg.DATASET.EDGE_EMBEDDING_SIZE
HIDDEN   = 32     # cfg.MODEL.FC_HIDDEN_SIZE
FEAT     = 16     # cfg.MODEL.GNN_FEAT_SIZE
GNN_LAYER = 2     # cfg.MODEL.GNN_LAYER
BS_ITER  = 10     # cfg.MODEL.BS_ITER_NUM
BS_EPS   = 1e-4   # cfg.MODEL.BS_EPSILON
ALPHA    = 200.0  # cfg.MODEL.NORM_ALPHA

_VMEM = pl.BlockSpec(memory_space=pltpu.MemorySpace.VMEM)


# --------------------------- in-kernel helpers -------------------------------
def _l2norm_rows(x):
    # torch F.normalize(p=2, dim=-1): x / max(||x||, 1e-12), via EUP rsqrt
    ss = jnp.sum(x * x, axis=-1, keepdims=True)
    return x * lax.rsqrt(jnp.maximum(ss, 1e-24))


def _mlp(x, w1, b1, w2, b2):
    # Linear -> ReLU -> Linear (activation after fc2 applied by caller)
    h = jnp.maximum(jnp.dot(x, w1, preferred_element_type=jnp.float32) + b1, 0.0)
    return jnp.dot(h, w2, preferred_element_type=jnp.float32) + b2


def _pairwise_sim(x, y):
    # sim = 1 - cdist(x, y) / cdist(x, y).max()  (euclidean, Gram identity)
    xx = jnp.sum(x * x, axis=-1, keepdims=True)                     # [n, 1]
    yy = jnp.sum(y * y, axis=-1, keepdims=True)                     # [m, 1]
    d2 = xx + yy.T - 2.0 * jnp.dot(x, y.T, preferred_element_type=jnp.float32)
    dist = jnp.sqrt(jnp.maximum(d2, 0.0))
    inv_max = pl.reciprocal(jnp.max(dist, keepdims=True), approx=True)
    return 1.0 - dist * inv_max


def _l1_col_norm(A):
    # torch F.normalize(A, p=1, dim=-2)
    col = jnp.sum(jnp.abs(A), axis=0, keepdims=True)
    return A * pl.reciprocal(jnp.maximum(col, 1e-12), approx=True)


def _affinity_full(X, Y, Asym):
    # M = X @ ((A + A^T)/2) @ Y^T  (Asym precomputed at init)
    m = jnp.dot(X, Asym, preferred_element_type=jnp.float32)
    return jnp.dot(m, Y.T, preferred_element_type=jnp.float32)


def _norm_sinkhorn(s_raw, mask):
    # Norm: row softmax of alpha*s over the FULL row (zero blocks included)
    z = ALPHA * s_raw
    z = z - jnp.max(z, axis=-1, keepdims=True)
    e = jnp.exp(z)
    s = e * pl.reciprocal(jnp.sum(e, axis=-1, keepdims=True), approx=True)
    # Sinkhorn: +eps, zero off-diagonal blocks, alternate col (even) / row
    # (odd) normalization — statically unrolled, one reduction per iteration.
    s = (s + BS_EPS) * mask
    for it in range(BS_ITER):
        if it % 2 == 0:
            denom = jnp.sum(s, axis=0, keepdims=True)   # column sums
        else:
            denom = jnp.sum(s, axis=1, keepdims=True)   # row sums
        s = s * pl.reciprocal(denom, approx=True)
    return s


def _cross_graph(e_self, agg, w1, w2, b):
    # Linear(cat(e_self, agg)) with weight pre-split into W1|W2
    return (jnp.dot(e_self, w1, preferred_element_type=jnp.float32)
            + jnp.dot(agg, w2, preferred_element_type=jnp.float32) + b)


# ------------------------------ fused kernel ---------------------------------
def net_kernel(x12_ref, ex12_ref, a1_ref, a2_ref,
               w1n_ref, b1n_ref, w2n_ref, b2n_ref,
               w1e_ref, b1e_ref, w2e_ref, b2e_ref,
               g0wa_ref, g0ba_ref, g0wu_ref, g0bu_ref, aff0_ref,
               g1wa_ref, g1ba_ref, g1wu_ref, g1bu_ref, aff1_ref,
               cw1_ref, cw2_ref, cb_ref,
               s_out_ref, kp_out_ref, ke_out_ref,
               e_scr,
               *, n1, n2, e1, e2):
    R1, R2 = n1 + e1, n2 + e2

    # ---- node / edge MLP embeddings (both graphs batched: shared weights) ---
    nodes = _l2norm_rows(_mlp(x12_ref[...], w1n_ref[...], b1n_ref[...],
                              w2n_ref[...], b2n_ref[...]))
    node1, node2 = nodes[:n1], nodes[n1:]
    kp_out_ref[...] = _pairwise_sim(node1, node2)

    edges = jax.nn.sigmoid(_mlp(ex12_ref[...], w1e_ref[...], b1e_ref[...],
                                w2e_ref[...], b2e_ref[...]))
    edg1, edg2 = edges[:e1], edges[e1:]
    ke_out_ref[...] = _pairwise_sim(edg1, edg2)

    # concatenated per-graph embeddings (graph1 nodes|edges, graph2 nodes|edges)
    # packed into one VMEM scratch slab so the per-layer Gconv linears run as a
    # single batched matmul across both graphs.
    e_scr[0:n1, :] = node1
    e_scr[n1:R1, :] = edg1
    e_scr[R1:R1 + n2, :] = node2
    e_scr[R1 + n2:R1 + R2, :] = edg2

    # ---- constants hoisted out of the layer loop -----------------------------
    A1 = _l1_col_norm(a1_ref[...])        # L1 column-normalize once per forward
    A2 = _l1_col_norm(a2_ref[...])
    ri = lax.broadcasted_iota(jnp.int32, (R1, R2), 0)
    ci = lax.broadcasted_iota(jnp.int32, (R1, R2), 1)
    blk = ((ri < n1) & (ci < n2)) | ((ri >= n1) & (ci >= n2))
    mask = jnp.where(blk, 1.0, 0.0)       # block-diagonal mask

    layer_params = ((g0wa_ref, g0ba_ref, g0wu_ref, g0bu_ref, aff0_ref),
                    (g1wa_ref, g1ba_ref, g1wu_ref, g1bu_ref, aff1_ref))

    s = None
    for i in range(GNN_LAYER):            # GNN_LAYER is static → unrolled
        wa_ref, ba_ref, wu_ref, bu_ref, aff_ref = layer_params[i]

        # Gconv linears batched over both graphs, then per-graph adjacency mix
        E = e_scr[...]
        ax = jnp.maximum(
            jnp.dot(E, wa_ref[...], preferred_element_type=jnp.float32)
            + ba_ref[...], 0.0)
        ux = jnp.maximum(
            jnp.dot(E, wu_ref[...], preferred_element_type=jnp.float32)
            + bu_ref[...], 0.0)
        emb1 = _l2norm_rows(
            jnp.dot(A1, ax[:R1], preferred_element_type=jnp.float32) + ux[:R1])
        emb2 = _l2norm_rows(
            jnp.dot(A2, ax[R1:], preferred_element_type=jnp.float32) + ux[R1:])

        # Affinity on the full concatenated embeddings; masking off-diagonal
        # blocks is equivalent to the two per-block affinity calls.
        s_raw = _affinity_full(emb1, emb2, aff_ref[...]) * mask
        s = _norm_sinkhorn(s_raw, mask)

        if i == GNN_LAYER - 2:
            agg1 = jnp.dot(s, emb2, preferred_element_type=jnp.float32)
            agg2 = jnp.dot(s.T, emb1, preferred_element_type=jnp.float32)
            e_scr[0:R1, :] = _cross_graph(emb1, agg1, cw1_ref[...],
                                          cw2_ref[...], cb_ref[...])
            e_scr[R1:R1 + R2, :] = _cross_graph(emb2, agg2, cw1_ref[...],
                                                cw2_ref[...], cb_ref[...])
        elif i < GNN_LAYER - 1:
            e_scr[0:R1, :] = emb1
            e_scr[R1:R1 + R2, :] = emb2

    s_out_ref[...] = s


# ------------------------------ parameters -----------------------------------
def _linear_init(key, fan_in, fan_out):
    # torch nn.Linear default init; stored as [in, out]
    kw, kb = jax.random.split(key)
    bound = 1.0 / math.sqrt(fan_in)
    w = jax.random.uniform(kw, (fan_in, fan_out), jnp.float32, -bound, bound)
    b = jax.random.uniform(kb, (1, fan_out), jnp.float32, -bound, bound)
    return w, b


def _affinity_init(key, d):
    stdv = 1.0 / math.sqrt(d)
    return (jax.random.uniform(key, (d, d), jnp.float32, -stdv, stdv)
            + jnp.eye(d, dtype=jnp.float32))


def init_params(key):
    keys = jax.random.split(key, 12)
    p = {}
    p["fc1_nodes"] = _linear_init(keys[0], NODE_EMB, HIDDEN)
    p["fc2_nodes"] = _linear_init(keys[1], HIDDEN, FEAT)
    p["fc1_edges"] = _linear_init(keys[2], EDGE_EMB, HIDDEN)
    p["fc2_edges"] = _linear_init(keys[3], HIDDEN, FEAT)
    for i in range(GNN_LAYER):
        p[f"gnn_{i}_a"] = _linear_init(keys[4 + 3 * i], FEAT, FEAT)
        p[f"gnn_{i}_u"] = _linear_init(keys[5 + 3 * i], FEAT, FEAT)
        A = _affinity_init(keys[6 + 3 * i], FEAT)
        p[f"aff_{i}_sym"] = (A + A.T) * 0.5     # hoisted (A + A^T)/2
    wc, bc = _linear_init(keys[4 + 3 * GNN_LAYER], FEAT * 2, FEAT)
    p["cross_w1"], p["cross_w2"], p["cross_b"] = wc[:FEAT], wc[FEAT:], bc
    return p


# ------------------------------ Net forward ----------------------------------
def net_forward(params, emb1, emb2, edge_emb1, edge_emb2, Aidx_src, Aidx_tgt):
    # squeeze batch (reference indexes [0] / operates on batch size 1)
    x1, x2 = emb1[0], emb2[0]
    ex1, ex2 = edge_emb1[0], edge_emb2[0]
    A_src, A_tgt = Aidx_src[0], Aidx_tgt[0]
    n1, n2 = x1.shape[0], x2.shape[0]
    e1, e2 = ex1.shape[0], ex2.shape[0]
    R1, R2 = n1 + e1, n2 + e2

    # stack graph-1 / graph-2 rows so shared-weight MLPs run as one matmul
    x12 = jnp.concatenate([x1, x2], axis=0)
    ex12 = jnp.concatenate([ex1, ex2], axis=0)

    inputs = (
        x12, ex12, A_src, A_tgt,
        *params["fc1_nodes"], *params["fc2_nodes"],
        *params["fc1_edges"], *params["fc2_edges"],
        *params["gnn_0_a"], *params["gnn_0_u"], params["aff_0_sym"],
        *params["gnn_1_a"], *params["gnn_1_u"], params["aff_1_sym"],
        params["cross_w1"], params["cross_w2"], params["cross_b"],
    )

    kernel = functools.partial(net_kernel, n1=n1, n2=n2, e1=e1, e2=e2)
    s, kp, ke = pl.pallas_call(
        kernel,
        out_shape=(
            jax.ShapeDtypeStruct((R1, R2), jnp.float32),
            jax.ShapeDtypeStruct((n1, n2), jnp.float32),
            jax.ShapeDtypeStruct((e1, e2), jnp.float32),
        ),
        in_specs=[_VMEM] * len(inputs),
        out_specs=(_VMEM, _VMEM, _VMEM),
        scratch_shapes=[
            pltpu.VMEM((R1 + R2, FEAT), jnp.float32),
        ],
    )(*inputs)

    # restore batch dim of 1 to match torch output shapes
    return s[None], kp[None], ke[None]


# --------------------------------- main ---------------------------------------
if __name__ == "__main__":
    n1, n2, e1, e2 = 8, 8, 8, 8
    key = jax.random.PRNGKey(0)
    kparam, k1, k2, k3, k4, k5, k6 = jax.random.split(key, 7)

    params = init_params(kparam)

    emb1 = jax.random.normal(k1, (1, n1, NODE_EMB), jnp.float32)
    emb2 = jax.random.normal(k2, (1, n2, NODE_EMB), jnp.float32)
    edge_emb1 = jax.random.normal(k3, (1, e1, EDGE_EMB), jnp.float32)
    edge_emb2 = jax.random.normal(k4, (1, e2, EDGE_EMB), jnp.float32)
    Aidx_src = jax.random.uniform(k5, (1, n1 + e1, n1 + e1), jnp.float32)
    Aidx_tgt = jax.random.uniform(k6, (1, n2 + e2, n2 + e2), jnp.float32)

    fwd = jax.jit(functools.partial(net_forward, params))
    s, Kp, Ke = fwd(emb1, emb2, edge_emb1, edge_emb2, Aidx_src, Aidx_tgt)
    jax.block_until_ready((s, Kp, Ke))

    assert s.shape == (1, n1 + e1, n2 + e2)
    assert Kp.shape == (1, n1, n2)
    assert Ke.shape == (1, e1, e2)
    assert bool(jnp.all(jnp.isfinite(s)))
    assert bool(jnp.all(jnp.isfinite(Kp)))
    assert bool(jnp.all(jnp.isfinite(Ke)))
    print("KERNEL_OK")
</pallas_src>

<mosaic_0001>
module attributes {stable_mosaic.version = 11 : i64} {
  func.func @net_kernel(%arg0: memref<16x16xf32, #tpu.memory_space<vmem>>, %arg1: memref<16x16xf32, #tpu.memory_space<vmem>>, %arg2: memref<16x16xf32, #tpu.memory_space<vmem>>, %arg3: memref<16x16xf32, #tpu.memory_space<vmem>>, %arg4: memref<16x32xf32, #tpu.memory_space<vmem>>, %arg5: memref<1x32xf32, #tpu.memory_space<vmem>>, %arg6: memref<32x16xf32, #tpu.memory_space<vmem>>, %arg7: memref<1x16xf32, #tpu.memory_space<vmem>>, %arg8: memref<16x32xf32, #tpu.memory_space<vmem>>, %arg9: memref<1x32xf32, #tpu.memory_space<vmem>>, %arg10: memref<32x16xf32, #tpu.memory_space<vmem>>, %arg11: memref<1x16xf32, #tpu.memory_space<vmem>>, %arg12: memref<16x16xf32, #tpu.memory_space<vmem>>, %arg13: memref<1x16xf32, #tpu.memory_space<vmem>>, %arg14: memref<16x16xf32, #tpu.memory_space<vmem>>, %arg15: memref<1x16xf32, #tpu.memory_space<vmem>>, %arg16: memref<16x16xf32, #tpu.memory_space<vmem>>, %arg17: memref<16x16xf32, #tpu.memory_space<vmem>>, %arg18: memref<1x16xf32, #tpu.memory_space<vmem>>, %arg19: memref<16x16xf32, #tpu.memory_space<vmem>>, %arg20: memref<1x16xf32, #tpu.memory_space<vmem>>, %arg21: memref<16x16xf32, #tpu.memory_space<vmem>>, %arg22: memref<16x16xf32, #tpu.memory_space<vmem>>, %arg23: memref<16x16xf32, #tpu.memory_space<vmem>>, %arg24: memref<1x16xf32, #tpu.memory_space<vmem>>, %arg25: memref<16x16xf32, #tpu.memory_space<vmem>>, %arg26: memref<8x8xf32, #tpu.memory_space<vmem>>, %arg27: memref<8x8xf32, #tpu.memory_space<vmem>>, %arg28: memref<32x16xf32, #tpu.memory_space<vmem>>) attributes {dimension_semantics = [], scalar_prefetch = 0 : i64, scratch_operands = 1 : i64, tpu.core_type = #tpu.core_type<tc>} {
    %c0 = arith.constant 0 : index
    %c0_0 = arith.constant 0 : index
    %0 = vector.load %arg0[%c0, %c0_0] : memref<16x16xf32, #tpu.memory_space<vmem>>, vector<16x16xf32>
    %c0_1 = arith.constant 0 : index
    %c0_2 = arith.constant 0 : index
    %1 = vector.load %arg4[%c0_1, %c0_2] : memref<16x32xf32, #tpu.memory_space<vmem>>, vector<16x32xf32>
    %c0_3 = arith.constant 0 : index
    %c0_4 = arith.constant 0 : index
    %2 = vector.load %arg5[%c0_3, %c0_4] : memref<1x32xf32, #tpu.memory_space<vmem>>, vector<1x32xf32>
    %c0_5 = arith.constant 0 : index
    %c0_6 = arith.constant 0 : index
    %3 = vector.load %arg6[%c0_5, %c0_6] : memref<32x16xf32, #tpu.memory_space<vmem>>, vector<32x16xf32>
    %c0_7 = arith.constant 0 : index
    %c0_8 = arith.constant 0 : index
    %4 = vector.load %arg7[%c0_7, %c0_8] : memref<1x16xf32, #tpu.memory_space<vmem>>, vector<1x16xf32>
    %cst = arith.constant dense<0.000000e+00> : vector<16x32xf32>
    %5 = tpu.matmul %0, %1, %cst {dimension_numbers = #tpu.dot_dimension_numbers<[1], [0], [0], [1], [0, 0, 1, 1], [], []>} : vector<16x16xf32>, vector<16x32xf32>, vector<16x32xf32> -> vector<16x32xf32>
    %6 = vector.broadcast %2 : vector<1x32xf32> to vector<16x32xf32>
    %7 = arith.addf %5, %6 : vector<16x32xf32>
    %cst_9 = arith.constant 0.000000e+00 : f32
    %8 = vector.broadcast %cst_9 : f32 to vector<16x32xf32>
    %9 = arith.maximumf %7, %8 : vector<16x32xf32>
    %cst_10 = arith.constant dense<0.000000e+00> : vector<16x16xf32>
    %10 = tpu.matmul %9, %3, %cst_10 {dimension_numbers = #tpu.dot_dimension_numbers<[1], [0], [0], [1], [0, 0, 1, 1], [], []>} : vector<16x32xf32>, vector<32x16xf32>, vector<16x16xf32> -> vector<16x16xf32>
    %11 = vector.broadcast %4 : vector<1x16xf32> to vector<16x16xf32>
    %12 = arith.addf %10, %11 : vector<16x16xf32>
    %13 = arith.mulf %12, %12 : vector<16x16xf32>
    %cst_11 = arith.constant dense<0.000000e+00> : vector<16xf32>
    %14 = vector.multi_reduction <add>, %13, %cst_11 [1] : vector<16x16xf32> to vector<16xf32>
    %15 = vector.shape_cast %14 : vector<16xf32> to vector<16x1xf32>
    %cst_12 = arith.constant 1.000000e-24 : f32
    %16 = vector.broadcast %cst_12 : f32 to vector<16x1xf32>
    %17 = arith.maximumf %15, %16 : vector<16x1xf32>
    %18 = math.rsqrt %17 : vector<16x1xf32>
    %19 = vector.broadcast %18 : vector<16x1xf32> to vector<16x16xf32>
    %20 = arith.mulf %12, %19 : vector<16x16xf32>
    %21 = vector.extract_strided_slice %20 {offsets = [0, 0], sizes = [8, 16], strides = [1, 1]} : vector<16x16xf32> to vector<8x16xf32>
    %22 = vector.extract_strided_slice %20 {offsets = [8, 0], sizes = [8, 16], strides = [1, 1]} : vector<16x16xf32> to vector<8x16xf32>
    %23 = arith.mulf %21, %21 : vector<8x16xf32>
    %cst_13 = arith.constant dense<0.000000e+00> : vector<8xf32>
    %24 = vector.multi_reduction <add>, %23, %cst_13 [1] : vector<8x16xf32> to vector<8xf32>
    %25 = vector.shape_cast %24 : vector<8xf32> to vector<8x1xf32>
    %26 = arith.mulf %22, %22 : vector<8x16xf32>
    %cst_14 = arith.constant dense<0.000000e+00> : vector<8xf32>
    %27 = vector.multi_reduction <add>, %26, %cst_14 [1] : vector<8x16xf32> to vector<8xf32>
    %28 = vector.shape_cast %27 : vector<8xf32> to vector<8x1xf32>
    %29 = tpu.transpose %28, [1, 0] : vector<8x1xf32> -> vector<1x8xf32>
    %30 = vector.broadcast %25 : vector<8x1xf32> to vector<8x8xf32>
    %31 = vector.broadcast %29 : vector<1x8xf32> to vector<8x8xf32>
    %32 = arith.addf %30, %31 : vector<8x8xf32>
    %33 = tpu.transpose %22, [1, 0] : vector<8x16xf32> -> vector<16x8xf32>
    %cst_15 = arith.constant dense<0.000000e+00> : vector<8x8xf32>
    %34 = tpu.matmul %21, %33, %cst_15 {dimension_numbers = #tpu.dot_dimension_numbers<[1], [0], [0], [1], [0, 0, 1, 1], [], []>} : vector<8x16xf32>, vector<16x8xf32>, vector<8x8xf32> -> vector<8x8xf32>
    %cst_16 = arith.constant 2.000000e+00 : f32
    %35 = vector.broadcast %cst_16 : f32 to vector<8x8xf32>
    %36 = arith.mulf %35, %34 : vector<8x8xf32>
    %37 = arith.subf %32, %36 : vector<8x8xf32>
    %cst_17 = arith.constant 0.000000e+00 : f32
    %38 = vector.broadcast %cst_17 : f32 to vector<8x8xf32>
    %39 = arith.maximumf %37, %38 : vector<8x8xf32>
    %40 = math.sqrt %39 : vector<8x8xf32>
    %41 = vector.shape_cast %40 : vector<8x8xf32> to vector<1x8x8xf32>
    %cst_18 = arith.constant dense<0xFF800000> : vector<1xf32>
    %42 = vector.multi_reduction <maximumf>, %41, %cst_18 [1, 2] : vector<1x8x8xf32> to vector<1xf32>
    %43 = vector.shape_cast %42 : vector<1xf32> to vector<1x1x1xf32>
    %44 = vector.extract %43[0, 0, 0] : f32 from vector<1x1x1xf32>
    %45 = vector.broadcast %44 : f32 to vector<1x1xf32>
    %46 = tpu.reciprocal %45 {approx = true} : vector<1x1xf32> -> vector<1x1xf32>
    %47 = vector.broadcast %46 : vector<1x1xf32> to vector<8x8xf32>
    %48 = arith.mulf %40, %47 : vector<8x8xf32>
    %cst_19 = arith.constant 1.000000e+00 : f32
    %49 = vector.broadcast %cst_19 : f32 to vector<8x8xf32>
    %50 = arith.subf %49, %48 : vector<8x8xf32>
    %c0_20 = arith.constant 0 : index
    %c0_21 = arith.constant 0 : index
    %51 = vector.load %arg26[%c0_20, %c0_21] : memref<8x8xf32, #tpu.memory_space<vmem>>, vector<8x8xf32>
    tpu.vector_store %arg26[%c0_20, %c0_21], %50 {strides = array<i32>} : memref<8x8xf32, #tpu.memory_space<vmem>>, vector<8x8xf32>,
    %c0_22 = arith.constant 0 : index
    %c0_23 = arith.constant 0 : index
    %52 = vector.load %arg1[%c0_22, %c0_23] : memref<16x16xf32, #tpu.memory_space<vmem>>, vector<16x16xf32>
    %c0_24 = arith.constant 0 : index
    %c0_25 = arith.constant 0 : index
    %53 = vector.load %arg8[%c0_24, %c0_25] : memref<16x32xf32, #tpu.memory_space<vmem>>, vector<16x32xf32>
    %c0_26 = arith.constant 0 : index
    %c0_27 = arith.constant 0 : index
    %54 = vector.load %arg9[%c0_26, %c0_27] : memref<1x32xf32, #tpu.memory_space<vmem>>, vector<1x32xf32>
    %c0_28 = arith.constant 0 : index
    %c0_29 = arith.constant 0 : index
    %55 = vector.load %arg10[%c0_28, %c0_29] : memref<32x16xf32, #tpu.memory_space<vmem>>, vector<32x16xf32>
    %c0_30 = arith.constant 0 : index
    %c0_31 = arith.constant 0 : index
    %56 = vector.load %arg11[%c0_30, %c0_31] : memref<1x16xf32, #tpu.memory_space<vmem>>, vector<1x16xf32>
    %cst_32 = arith.constant dense<0.000000e+00> : vector<16x32xf32>
    %57 = tpu.matmul %52, %53, %cst_32 {dimension_numbers = #tpu.dot_dimension_numbers<[1], [0], [0], [1], [0, 0, 1, 1], [], []>} : vector<16x16xf32>, vector<16x32xf32>, vector<16x32xf32> -> vector<16x32xf32>
    %58 = vector.broadcast %54 : vector<1x32xf32> to vector<16x32xf32>
    %59 = arith.addf %57, %58 : vector<16x32xf32>
    %cst_33 = arith.constant 0.000000e+00 : f32
    %60 = vector.broadcast %cst_33 : f32 to vector<16x32xf32>
    %61 = arith.maximumf %59, %60 : vector<16x32xf32>
    %cst_34 = arith.constant dense<0.000000e+00> : vector<16x16xf32>
    %62 = tpu.matmul %61, %55, %cst_34 {dimension_numbers = #tpu.dot_dimension_numbers<[1], [0], [0], [1], [0, 0, 1, 1], [], []>} : vector<16x32xf32>, vector<32x16xf32>, vector<16x16xf32> -> vector<16x16xf32>
    %63 = vector.broadcast %56 : vector<1x16xf32> to vector<16x16xf32>
    %64 = arith.addf %62, %63 : vector<16x16xf32>
    %65 = arith.negf %64 : vector<16x16xf32>
    %66 = math.exp %65 : vector<16x16xf32>
    %cst_35 = arith.constant 1.000000e+00 : f32
    %67 = vector.broadcast %cst_35 : f32 to vector<16x16xf32>
    %68 = arith.addf %67, %66 : vector<16x16xf32>
    %69 = arith.divf %67, %68 : vector<16x16xf32>
    %70 = vector.extract_strided_slice %69 {offsets = [0, 0], sizes = [8, 16], strides = [1, 1]} : vector<16x16xf32> to vector<8x16xf32>
    %71 = vector.extract_strided_slice %69 {offsets = [8, 0], sizes = [8, 16], strides = [1, 1]} : vector<16x16xf32> to vector<8x16xf32>
    %72 = arith.mulf %70, %70 : vector<8x16xf32>
    %cst_36 = arith.constant dense<0.000000e+00> : vector<8xf32>
    %73 = vector.multi_reduction <add>, %72, %cst_36 [1] : vector<8x16xf32> to vector<8xf32>
    %74 = vector.shape_cast %73 : vector<8xf32> to vector<8x1xf32>
    %75 = arith.mulf %71, %71 : vector<8x16xf32>
    %cst_37 = arith.constant dense<0.000000e+00> : vector<8xf32>
    %76 = vector.multi_reduction <add>, %75, %cst_37 [1] : vector<8x16xf32> to vector<8xf32>
    %77 = vector.shape_cast %76 : vector<8xf32> to vector<8x1xf32>
    %78 = tpu.transpose %77, [1, 0] : vector<8x1xf32> -> vector<1x8xf32>
    %79 = vector.broadcast %74 : vector<8x1xf32> to vector<8x8xf32>
    %80 = vector.broadcast %78 : vector<1x8xf32> to vector<8x8xf32>
    %81 = arith.addf %79, %80 : vector<8x8xf32>
    %82 = tpu.transpose %71, [1, 0] : vector<8x16xf32> -> vector<16x8xf32>
    %cst_38 = arith.constant dense<0.000000e+00> : vector<8x8xf32>
    %83 = tpu.matmul %70, %82, %cst_38 {dimension_numbers = #tpu.dot_dimension_numbers<[1], [0], [0], [1], [0, 0, 1, 1], [], []>} : vector<8x16xf32>, vector<16x8xf32>, vector<8x8xf32> -> vector<8x8xf32>
    %cst_39 = arith.constant 2.000000e+00 : f32
    %84 = vector.broadcast %cst_39 : f32 to vector<8x8xf32>
    %85 = arith.mulf %84, %83 : vector<8x8xf32>
    %86 = arith.subf %81, %85 : vector<8x8xf32>
    %cst_40 = arith.constant 0.000000e+00 : f32
    %87 = vector.broadcast %cst_40 : f32 to vector<8x8xf32>
    %88 = arith.maximumf %86, %87 : vector<8x8xf32>
    %89 = math.sqrt %88 : vector<8x8xf32>
    %90 = vector.shape_cast %89 : vector<8x8xf32> to vector<1x8x8xf32>
    %cst_41 = arith.constant dense<0xFF800000> : vector<1xf32>
    %91 = vector.multi_reduction <maximumf>, %90, %cst_41 [1, 2] : vector<1x8x8xf32> to vector<1xf32>
    %92 = vector.shape_cast %91 : vector<1xf32> to vector<1x1x1xf32>
    %93 = vector.extract %92[0, 0, 0] : f32 from vector<1x1x1xf32>
    %94 = vector.broadcast %93 : f32 to vector<1x1xf32>
    %95 = tpu.reciprocal %94 {approx = true} : vector<1x1xf32> -> vector<1x1xf32>
    %96 = vector.broadcast %95 : vector<1x1xf32> to vector<8x8xf32>
    %97 = arith.mulf %89, %96 : vector<8x8xf32>
    %cst_42 = arith.constant 1.000000e+00 : f32
    %98 = vector.broadcast %cst_42 : f32 to vector<8x8xf32>
    %99 = arith.subf %98, %97 : vector<8x8xf32>
    %c0_43 = arith.constant 0 : index
    %c0_44 = arith.constant 0 : index
    %100 = vector.load %arg27[%c0_43, %c0_44] : memref<8x8xf32, #tpu.memory_space<vmem>>, vector<8x8xf32>
    tpu.vector_store %arg27[%c0_43, %c0_44], %99 {strides = array<i32>} : memref<8x8xf32, #tpu.memory_space<vmem>>, vector<8x8xf32>,
    %c0_45 = arith.constant 0 : index
    %c0_46 = arith.constant 0 : index
    %101 = vector.load %arg28[%c0_45, %c0_46] : memref<32x16xf32, #tpu.memory_space<vmem>>, vector<8x16xf32>
    tpu.vector_store %arg28[%c0_45, %c0_46], %21 {strides = array<i32>} : memref<32x16xf32, #tpu.memory_space<vmem>>, vector<8x16xf32>,
    %c8 = arith.constant 8 : index
    %c0_47 = arith.constant 0 : index
    %102 = vector.load %arg28[%c8, %c0_47] : memref<32x16xf32, #tpu.memory_space<vmem>>, vector<8x16xf32>
    tpu.vector_store %arg28[%c8, %c0_47], %70 {strides = array<i32>} : memref<32x16xf32, #tpu.memory_space<vmem>>, vector<8x16xf32>,
    %c16 = arith.constant 16 : index
    %c0_48 = arith.constant 0 : index
    %103 = vector.load %arg28[%c16, %c0_48] : memref<32x16xf32, #tpu.memory_space<vmem>>, vector<8x16xf32>
    tpu.vector_store %arg28[%c16, %c0_48], %22 {strides = array<i32>} : memref<32x16xf32, #tpu.memory_space<vmem>>, vector<8x16xf32>,
    %c24 = arith.constant 24 : index
    %c0_49 = arith.constant 0 : index
    %104 = vector.load %arg28[%c24, %c0_49] : memref<32x16xf32, #tpu.memory_space<vmem>>, vector<8x16xf32>
    tpu.vector_store %arg28[%c24, %c0_49], %71 {strides = array<i32>} : memref<32x16xf32, #tpu.memory_space<vmem>>, vector<8x16xf32>,
    %c0_50 = arith.constant 0 : index
    %c0_51 = arith.constant 0 : index
    %105 = vector.load %arg2[%c0_50, %c0_51] : memref<16x16xf32, #tpu.memory_space<vmem>>, vector<16x16xf32>
    %106 = math.absf %105 : vector<16x16xf32>
    %cst_52 = arith.constant dense<0.000000e+00> : vector<16xf32>
    %107 = vector.multi_reduction <add>, %106, %cst_52 [0] : vector<16x16xf32> to vector<16xf32>
    %108 = vector.shape_cast %107 : vector<16xf32> to vector<1x16xf32>
    %cst_53 = arith.constant 9.99999996E-13 : f32
    %109 = vector.broadcast %cst_53 : f32 to vector<1x16xf32>
    %110 = arith.maximumf %108, %109 : vector<1x16xf32>
    %111 = tpu.reciprocal %110 {approx = true} : vector<1x16xf32> -> vector<1x16xf32>
    %112 = vector.broadcast %111 : vector<1x16xf32> to vector<16x16xf32>
    %113 = arith.mulf %105, %112 : vector<16x16xf32>
    %c0_54 = arith.constant 0 : index
    %c0_55 = arith.constant 0 : index
    %114 = vector.load %arg3[%c0_54, %c0_55] : memref<16x16xf32, #tpu.memory_space<vmem>>, vector<16x16xf32>
    %115 = math.absf %114 : vector<16x16xf32>
    %cst_56 = arith.constant dense<0.000000e+00> : vector<16xf32>
    %116 = vector.multi_reduction <add>, %115, %cst_56 [0] : vector<16x16xf32> to vector<16xf32>
    %117 = vector.shape_cast %116 : vector<16xf32> to vector<1x16xf32>
    %cst_57 = arith.constant 9.99999996E-13 : f32
    %118 = vector.broadcast %cst_57 : f32 to vector<1x16xf32>
    %119 = arith.maximumf %117, %118 : vector<1x16xf32>
    %120 = tpu.reciprocal %119 {approx = true} : vector<1x16xf32> -> vector<1x16xf32>
    %121 = vector.broadcast %120 : vector<1x16xf32> to vector<16x16xf32>
    %122 = arith.mulf %114, %121 : vector<16x16xf32>
    %123 = tpu.iota {dimensions = array<i32: 0>} : vector<16x16xi32>
    %124 = tpu.iota {dimensions = array<i32: 1>} : vector<16x16xi32>
    %c8_i32 = arith.constant 8 : i32
    %125 = vector.broadcast %c8_i32 : i32 to vector<16x16xi32>
    %126 = arith.cmpi slt, %123, %125 : vector<16x16xi32>
    %c8_i32_58 = arith.constant 8 : i32
    %127 = vector.broadcast %c8_i32_58 : i32 to vector<16x16xi32>
    %128 = arith.cmpi slt, %124, %127 : vector<16x16xi32>
    %129 = arith.andi %126, %128 : vector<16x16xi1>
    %c8_i32_59 = arith.constant 8 : i32
    %130 = vector.broadcast %c8_i32_59 : i32 to vector<16x16xi32>
    %131 = arith.cmpi sge, %123, %130 : vector<16x16xi32>
    %c8_i32_60 = arith.constant 8 : i32
    %132 = vector.broadcast %c8_i32_60 : i32 to vector<16x16xi32>
    %133 = arith.cmpi sge, %124, %132 : vector<16x16xi32>
    %134 = arith.andi %131, %133 : vector<16x16xi1>
    %135 = arith.ori %129, %134 : vector<16x16xi1>
    %cst_61 = arith.constant 1.000000e+00 : f32
    %cst_62 = arith.constant 0.000000e+00 : f32
    %136 = vector.broadcast %cst_61 : f32 to vector<16x16xf32>
    %137 = vector.broadcast %cst_62 : f32 to vector<16x16xf32>
    %138 = arith.select %135, %136, %137 : vector<16x16xi1>, vector<16x16xf32>
    %c0_63 = arith.constant 0 : index
    %c0_64 = arith.constant 0 : index
    %139 = vector.load %arg28[%c0_63, %c0_64] : memref<32x16xf32, #tpu.memory_space<vmem>>, vector<32x16xf32>
    %c0_65 = arith.constant 0 : index
    %c0_66 = arith.constant 0 : index
    %140 = vector.load %arg12[%c0_65, %c0_66] : memref<16x16xf32, #tpu.memory_space<vmem>>, vector<16x16xf32>
    %cst_67 = arith.constant dense<0.000000e+00> : vector<32x16xf32>
    %141 = tpu.matmul %139, %140, %cst_67 {dimension_numbers = #tpu.dot_dimension_numbers<[1], [0], [0], [1], [0, 0, 1, 1], [], []>} : vector<32x16xf32>, vector<16x16xf32>, vector<32x16xf32> -> vector<32x16xf32>
    %c0_68 = arith.constant 0 : index
    %c0_69 = arith.constant 0 : index
    %142 = vector.load %arg13[%c0_68, %c0_69] : memref<1x16xf32, #tpu.memory_space<vmem>>, vector<1x16xf32>
    %143 = vector.broadcast %142 : vector<1x16xf32> to vector<32x16xf32>
    %144 = arith.addf %141, %143 : vector<32x16xf32>
    %cst_70 = arith.constant 0.000000e+00 : f32
    %145 = vector.broadcast %cst_70 : f32 to vector<32x16xf32>
    %146 = arith.maximumf %144, %145 : vector<32x16xf32>
    %c0_71 = arith.constant 0 : index
    %c0_72 = arith.constant 0 : index
    %147 = vector.load %arg14[%c0_71, %c0_72] : memref<16x16xf32, #tpu.memory_space<vmem>>, vector<16x16xf32>
    %cst_73 = arith.constant dense<0.000000e+00> : vector<32x16xf32>
    %148 = tpu.matmul %139, %147, %cst_73 {dimension_numbers = #tpu.dot_dimension_numbers<[1], [0], [0], [1], [0, 0, 1, 1], [], []>} : vector<32x16xf32>, vector<16x16xf32>, vector<32x16xf32> -> vector<32x16xf32>
    %c0_74 = arith.constant 0 : index
    %c0_75 = arith.constant 0 : index
    %149 = vector.load %arg15[%c0_74, %c0_75] : memref<1x16xf32, #tpu.memory_space<vmem>>, vector<1x16xf32>
    %150 = vector.broadcast %149 : vector<1x16xf32> to vector<32x16xf32>
    %151 = arith.addf %148, %150 : vector<32x16xf32>
    %cst_76 = arith.constant 0.000000e+00 : f32
    %152 = vector.broadcast %cst_76 : f32 to vector<32x16xf32>
    %153 = arith.maximumf %151, %152 : vector<32x16xf32>
    %154 = vector.extract_strided_slice %146 {offsets = [0, 0], sizes = [16, 16], strides = [1, 1]} : vector<32x16xf32> to vector<16x16xf32>
    %cst_77 = arith.constant dense<0.000000e+00> : vector<16x16xf32>
    %155 = tpu.matmul %113, %154, %cst_77 {dimension_numbers = #tpu.dot_dimension_numbers<[1], [0], [0], [1], [0, 0, 1, 1], [], []>} : vector<16x16xf32>, vector<16x16xf32>, vector<16x16xf32> -> vector<16x16xf32>
    %156 = vector.extract_strided_slice %153 {offsets = [0, 0], sizes = [16, 16], strides = [1, 1]} : vector<32x16xf32> to vector<16x16xf32>
    %157 = arith.addf %155, %156 : vector<16x16xf32>
    %158 = arith.mulf %157, %157 : vector<16x16xf32>
    %cst_78 = arith.constant dense<0.000000e+00> : vector<16xf32>
    %159 = vector.multi_reduction <add>, %158, %cst_78 [1] : vector<16x16xf32> to vector<16xf32>
    %160 = vector.shape_cast %159 : vector<16xf32> to vector<16x1xf32>
    %cst_79 = arith.constant 1.000000e-24 : f32
    %161 = vector.broadcast %cst_79 : f32 to vector<16x1xf32>
    %162 = arith.maximumf %160, %161 : vector<16x1xf32>
    %163 = math.rsqrt %162 : vector<16x1xf32>
    %164 = vector.broadcast %163 : vector<16x1xf32> to vector<16x16xf32>
    %165 = arith.mulf %157, %164 : vector<16x16xf32>
    %166 = vector.extract_strided_slice %146 {offsets = [16, 0], sizes = [16, 16], strides = [1, 1]} : vector<32x16xf32> to vector<16x16xf32>
    %cst_80 = arith.constant dense<0.000000e+00> : vector<16x16xf32>
    %167 = tpu.matmul %122, %166, %cst_80 {dimension_numbers = #tpu.dot_dimension_numbers<[1], [0], [0], [1], [0, 0, 1, 1], [], []>} : vector<16x16xf32>, vector<16x16xf32>, vector<16x16xf32> -> vector<16x16xf32>
    %168 = vector.extract_strided_slice %153 {offsets = [16, 0], sizes = [16, 16], strides = [1, 1]} : vector<32x16xf32> to vector<16x16xf32>
    %169 = arith.addf %167, %168 : vector<16x16xf32>
    %170 = arith.mulf %169, %169 : vector<16x16xf32>
    %cst_81 = arith.constant dense<0.000000e+00> : vector<16xf32>
    %171 = vector.multi_reduction <add>, %170, %cst_81 [1] : vector<16x16xf32> to vector<16xf32>
    %172 = vector.shape_cast %171 : vector<16xf32> to vector<16x1xf32>
    %cst_82 = arith.constant 1.000000e-24 : f32
    %173 = vector.broadcast %cst_82 : f32 to vector<16x1xf32>
    %174 = arith.maximumf %172, %173 : vector<16x1xf32>
    %175 = math.rsqrt %174 : vector<16x1xf32>
    %176 = vector.broadcast %175 : vector<16x1xf32> to vector<16x16xf32>
    %177 = arith.mulf %169, %176 : vector<16x16xf32>
    %c0_83 = arith.constant 0 : index
    %c0_84 = arith.constant 0 : index
    %178 = vector.load %arg16[%c0_83, %c0_84] : memref<16x16xf32, #tpu.memory_space<vmem>>, vector<16x16xf32>
    %cst_85 = arith.constant dense<0.000000e+00> : vector<16x16xf32>
    %179 = tpu.matmul %165, %178, %cst_85 {dimension_numbers = #tpu.dot_dimension_numbers<[1], [0], [0], [1], [0, 0, 1, 1], [], []>} : vector<16x16xf32>, vector<16x16xf32>, vector<16x16xf32> -> vector<16x16xf32>
    %180 = tpu.transpose %177, [1, 0] : vector<16x16xf32> -> vector<16x16xf32>
    %cst_86 = arith.constant dense<0.000000e+00> : vector<16x16xf32>
    %181 = tpu.matmul %179, %180, %cst_86 {dimension_numbers = #tpu.dot_dimension_numbers<[1], [0], [0], [1], [0, 0, 1, 1], [], []>} : vector<16x16xf32>, vector<16x16xf32>, vector<16x16xf32> -> vector<16x16xf32>
    %182 = arith.mulf %181, %138 : vector<16x16xf32>
    %cst_87 = arith.constant 2.000000e+02 : f32
    %183 = vector.broadcast %cst_87 : f32 to vector<16x16xf32>
    %184 = arith.mulf %183, %182 : vector<16x16xf32>
    %cst_88 = arith.constant dense<0xFF800000> : vector<16xf32>
    %185 = vector.multi_reduction <maximumf>, %184, %cst_88 [1] : vector<16x16xf32> to vector<16xf32>
    %186 = vector.shape_cast %185 : vector<16xf32> to vector<16x1xf32>
    %187 = vector.broadcast %186 : vector<16x1xf32> to vector<16x16xf32>
    %188 = arith.subf %184, %187 : vector<16x16xf32>
    %189 = math.exp %188 : vector<16x16xf32>
    %cst_89 = arith.constant dense<0.000000e+00> : vector<16xf32>
    %190 = vector.multi_reduction <add>, %189, %cst_89 [1] : vector<16x16xf32> to vector<16xf32>
    %191 = vector.shape_cast %190 : vector<16xf32> to vector<16x1xf32>
    %192 = tpu.reciprocal %191 {approx = true} : vector<16x1xf32> -> vector<16x1xf32>
    %193 = vector.broadcast %192 : vector<16x1xf32> to vector<16x16xf32>
    %194 = arith.mulf %189, %193 : vector<16x16xf32>
    %cst_90 = arith.constant 9.99999974E-5 : f32
    %195 = vector.broadcast %cst_90 : f32 to vector<16x16xf32>
    %196 = arith.addf %194, %195 : vector<16x16xf32>
    %197 = arith.mulf %196, %138 : vector<16x16xf32>
    %cst_91 = arith.constant dense<0.000000e+00> : vector<16xf32>
    %198 = vector.multi_reduction <add>, %197, %cst_91 [0] : vector<16x16xf32> to vector<16xf32>
    %199 = vector.shape_cast %198 : vector<16xf32> to vector<1x16xf32>
    %200 = tpu.reciprocal %199 {approx = true} : vector<1x16xf32> -> vector<1x16xf32>
    %201 = vector.broadcast %200 : vector<1x16xf32> to vector<16x16xf32>
    %202 = arith.mulf %197, %201 : vector<16x16xf32>
    %cst_92 = arith.constant dense<0.000000e+00> : vector<16xf32>
    %203 = vector.multi_reduction <add>, %202, %cst_92 [1] : vector<16x16xf32> to vector<16xf32>
    %204 = vector.shape_cast %203 : vector<16xf32> to vector<16x1xf32>
    %205 = tpu.reciprocal %204 {approx = true} : vector<16x1xf32> -> vector<16x1xf32>
    %206 = vector.broadcast %205 : vector<16x1xf32> to vector<16x16xf32>
    %207 = arith.mulf %202, %206 : vector<16x16xf32>
    %cst_93 = arith.constant dense<0.000000e+00> : vector<16xf32>
    %208 = vector.multi_reduction <add>, %207, %cst_93 [0] : vector<16x16xf32> to vector<16xf32>
    %209 = vector.shape_cast %208 : vector<16xf32> to vector<1x16xf32>
    %210 = tpu.reciprocal %209 {approx = true} : vector<1x16xf32> -> vector<1x16xf32>
    %211 = vector.broadcast %210 : vector<1x16xf32> to vector<16x16xf32>
    %212 = arith.mulf %207, %211 : vector<16x16xf32>
    %cst_94 = arith.constant dense<0.000000e+00> : vector<16xf32>
    %213 = vector.multi_reduction <add>, %212, %cst_94 [1] : vector<16x16xf32> to vector<16xf32>
    %214 = vector.shape_cast %213 : vector<16xf32> to vector<16x1xf32>
    %215 = tpu.reciprocal %214 {approx = true} : vector<16x1xf32> -> vector<16x1xf32>
    %216 = vector.broadcast %215 : vector<16x1xf32> to vector<16x16xf32>
    %217 = arith.mulf %212, %216 : vector<16x16xf32>
    %cst_95 = arith.constant dense<0.000000e+00> : vector<16xf32>
    %218 = vector.multi_reduction <add>, %217, %cst_95 [0] : vector<16x16xf32> to vector<16xf32>
    %219 = vector.shape_cast %218 : vector<16xf32> to vector<1x16xf32>
    %220 = tpu.reciprocal %219 {approx = true} : vector<1x16xf32> -> vector<1x16xf32>
    %221 = vector.broadcast %220 : vector<1x16xf32> to vector<16x16xf32>
    %222 = arith.mulf %217, %221 : vector<16x16xf32>
    %cst_96 = arith.constant dense<0.000000e+00> : vector<16xf32>
    %223 = vector.multi_reduction <add>, %222, %cst_96 [1] : vector<16x16xf32> to vector<16xf32>
    %224 = vector.shape_cast %223 : vector<16xf32> to vector<16x1xf32>
    %225 = tpu.reciprocal %224 {approx = true} : vector<16x1xf32> -> vector<16x1xf32>
    %226 = vector.broadcast %225 : vector<16x1xf32> to vector<16x16xf32>
    %227 = arith.mulf %222, %226 : vector<16x16xf32>
    %cst_97 = arith.constant dense<0.000000e+00> : vector<16xf32>
    %228 = vector.multi_reduction <add>, %227, %cst_97 [0] : vector<16x16xf32> to vector<16xf32>
    %229 = vector.shape_cast %228 : vector<16xf32> to vector<1x16xf32>
    %230 = tpu.reciprocal %229 {approx = true} : vector<1x16xf32> -> vector<1x16xf32>
    %231 = vector.broadcast %230 : vector<1x16xf32> to vector<16x16xf32>
    %232 = arith.mulf %227, %231 : vector<16x16xf32>
    %cst_98 = arith.constant dense<0.000000e+00> : vector<16xf32>
    %233 = vector.multi_reduction <add>, %232, %cst_98 [1] : vector<16x16xf32> to vector<16xf32>
    %234 = vector.shape_cast %233 : vector<16xf32> to vector<16x1xf32>
    %235 = tpu.reciprocal %234 {approx = true} : vector<16x1xf32> -> vector<16x1xf32>
    %236 = vector.broadcast %235 : vector<16x1xf32> to vector<16x16xf32>
    %237 = arith.mulf %232, %236 : vector<16x16xf32>
    %cst_99 = arith.constant dense<0.000000e+00> : vector<16xf32>
    %238 = vector.multi_reduction <add>, %237, %cst_99 [0] : vector<16x16xf32> to vector<16xf32>
    %239 = vector.shape_cast %238 : vector<16xf32> to vector<1x16xf32>
    %240 = tpu.reciprocal %239 {approx = true} : vector<1x16xf32> -> vector<1x16xf32>
    %241 = vector.broadcast %240 : vector<1x16xf32> to vector<16x16xf32>
    %242 = arith.mulf %237, %241 : vector<16x16xf32>
    %cst_100 = arith.constant dense<0.000000e+00> : vector<16xf32>
    %243 = vector.multi_reduction <add>, %242, %cst_100 [1] : vector<16x16xf32> to vector<16xf32>
    %244 = vector.shape_cast %243 : vector<16xf32> to vector<16x1xf32>
    %245 = tpu.reciprocal %244 {approx = true} : vector<16x1xf32> -> vector<16x1xf32>
    %246 = vector.broadcast %245 : vector<16x1xf32> to vector<16x16xf32>
    %247 = arith.mulf %242, %246 : vector<16x16xf32>
    %cst_101 = arith.constant dense<0.000000e+00> : vector<16x16xf32>
    %248 = tpu.matmul %247, %177, %cst_101 {dimension_numbers = #tpu.dot_dimension_numbers<[1], [0], [0], [1], [0, 0, 1, 1], [], []>} : vector<16x16xf32>, vector<16x16xf32>, vector<16x16xf32> -> vector<16x16xf32>
    %249 = tpu.transpose %247, [1, 0] : vector<16x16xf32> -> vector<16x16xf32>
    %cst_102 = arith.constant dense<0.000000e+00> : vector<16x16xf32>
    %250 = tpu.matmul %249, %165, %cst_102 {dimension_numbers = #tpu.dot_dimension_numbers<[1], [0], [0], [1], [0, 0, 1, 1], [], []>} : vector<16x16xf32>, vector<16x16xf32>, vector<16x16xf32> -> vector<16x16xf32>
    %c0_103 = arith.constant 0 : index
    %c0_104 = arith.constant 0 : index
    %251 = vector.load %arg22[%c0_103, %c0_104] : memref<16x16xf32, #tpu.memory_space<vmem>>, vector<16x16xf32>
    %c0_105 = arith.constant 0 : index
    %c0_106 = arith.constant 0 : index
    %252 = vector.load %arg23[%c0_105, %c0_106] : memref<16x16xf32, #tpu.memory_space<vmem>>, vector<16x16xf32>
    %c0_107 = arith.constant 0 : index
    %c0_108 = arith.constant 0 : index
    %253 = vector.load %arg24[%c0_107, %c0_108] : memref<1x16xf32, #tpu.memory_space<vmem>>, vector<1x16xf32>
    %cst_109 = arith.constant dense<0.000000e+00> : vector<16x16xf32>
    %254 = tpu.matmul %165, %251, %cst_109 {dimension_numbers = #tpu.dot_dimension_numbers<[1], [0], [0], [1], [0, 0, 1, 1], [], []>} : vector<16x16xf32>, vector<16x16xf32>, vector<16x16xf32> -> vector<16x16xf32>
    %cst_110 = arith.constant dense<0.000000e+00> : vector<16x16xf32>
    %255 = tpu.matmul %248, %252, %cst_110 {dimension_numbers = #tpu.dot_dimension_numbers<[1], [0], [0], [1], [0, 0, 1, 1], [], []>} : vector<16x16xf32>, vector<16x16xf32>, vector<16x16xf32> -> vector<16x16xf32>
    %256 = arith.addf %254, %255 : vector<16x16xf32>
    %257 = vector.broadcast %253 : vector<1x16xf32> to vector<16x16xf32>
    %258 = arith.addf %256, %257 : vector<16x16xf32>
    %c0_111 = arith.constant 0 : index
    %c0_112 = arith.constant 0 : index
    %259 = vector.load %arg28[%c0_111, %c0_112] : memref<32x16xf32, #tpu.memory_space<vmem>>, vector<16x16xf32>
    tpu.vector_store %arg28[%c0_111, %c0_112], %258 {strides = array<i32>} : memref<32x16xf32, #tpu.memory_space<vmem>>, vector<16x16xf32>,
    %c0_113 = arith.constant 0 : index
    %c0_114 = arith.constant 0 : index
    %260 = vector.load %arg22[%c0_113, %c0_114] : memref<16x16xf32, #tpu.memory_space<vmem>>, vector<16x16xf32>
    %c0_115 = arith.constant 0 : index
    %c0_116 = arith.constant 0 : index
    %261 = vector.load %arg23[%c0_115, %c0_116] : memref<16x16xf32, #tpu.memory_space<vmem>>, vector<16x16xf32>
    %c0_117 = arith.constant 0 : index
    %c0_118 = arith.constant 0 : index
    %262 = vector.load %arg24[%c0_117, %c0_118] : memref<1x16xf32, #tpu.memory_space<vmem>>, vector<1x16xf32>
    %cst_119 = arith.constant dense<0.000000e+00> : vector<16x16xf32>
    %263 = tpu.matmul %177, %260, %cst_119 {dimension_numbers = #tpu.dot_dimension_numbers<[1], [0], [0], [1], [0, 0, 1, 1], [], []>} : vector<16x16xf32>, vector<16x16xf32>, vector<16x16xf32> -> vector<16x16xf32>
    %cst_120 = arith.constant dense<0.000000e+00> : vector<16x16xf32>
    %264 = tpu.matmul %250, %261, %cst_120 {dimension_numbers = #tpu.dot_dimension_numbers<[1], [0], [0], [1], [0, 0, 1, 1], [], []>} : vector<16x16xf32>, vector<16x16xf32>, vector<16x16xf32> -> vector<16x16xf32>
    %265 = arith.addf %263, %264 : vector<16x16xf32>
    %266 = vector.broadcast %262 : vector<1x16xf32> to vector<16x16xf32>
    %267 = arith.addf %265, %266 : vector<16x16xf32>
    %c16_121 = arith.constant 16 : index
    %c0_122 = arith.constant 0 : index
    %268 = vector.load %arg28[%c16_121, %c0_122] : memref<32x16xf32, #tpu.memory_space<vmem>>, vector<16x16xf32>
    tpu.vector_store %arg28[%c16_121, %c0_122], %267 {strides = array<i32>} : memref<32x16xf32, #tpu.memory_space<vmem>>, vector<16x16xf32>,
    %c0_123 = arith.constant 0 : index
    %c0_124 = arith.constant 0 : index
    %269 = vector.load %arg28[%c0_123, %c0_124] : memref<32x16xf32, #tpu.memory_space<vmem>>, vector<32x16xf32>
    %c0_125 = arith.constant 0 : index
    %c0_126 = arith.constant 0 : index
    %270 = vector.load %arg17[%c0_125, %c0_126] : memref<16x16xf32, #tpu.memory_space<vmem>>, vector<16x16xf32>
    %cst_127 = arith.constant dense<0.000000e+00> : vector<32x16xf32>
    %271 = tpu.matmul %269, %270, %cst_127 {dimension_numbers = #tpu.dot_dimension_numbers<[1], [0], [0], [1], [0, 0, 1, 1], [], []>} : vector<32x16xf32>, vector<16x16xf32>, vector<32x16xf32> -> vector<32x16xf32>
    %c0_128 = arith.constant 0 : index
    %c0_129 = arith.constant 0 : index
    %272 = vector.load %arg18[%c0_128, %c0_129] : memref<1x16xf32, #tpu.memory_space<vmem>>, vector<1x16xf32>
    %273 = vector.broadcast %272 : vector<1x16xf32> to vector<32x16xf32>
    %274 = arith.addf %271, %273 : vector<32x16xf32>
    %cst_130 = arith.constant 0.000000e+00 : f32
    %275 = vector.broadcast %cst_130 : f32 to vector<32x16xf32>
    %276 = arith.maximumf %274, %275 : vector<32x16xf32>
    %c0_131 = arith.constant 0 : index
    %c0_132 = arith.constant 0 : index
    %277 = vector.load %arg19[%c0_131, %c0_132] : memref<16x16xf32, #tpu.memory_space<vmem>>, vector<16x16xf32>
    %cst_133 = arith.constant dense<0.000000e+00> : vector<32x16xf32>
    %278 = tpu.matmul %269, %277, %cst_133 {dimension_numbers = #tpu.dot_dimension_numbers<[1], [0], [0], [1], [0, 0, 1, 1], [], []>} : vector<32x16xf32>, vector<16x16xf32>, vector<32x16xf32> -> vector<32x16xf32>
    %c0_134 = arith.constant 0 : index
    %c0_135 = arith.constant 0 : index
    %279 = vector.load %arg20[%c0_134, %c0_135] : memref<1x16xf32, #tpu.memory_space<vmem>>, vector<1x16xf32>
    %280 = vector.broadcast %279 : vector<1x16xf32> to vector<32x16xf32>
    %281 = arith.addf %278, %280 : vector<32x16xf32>
    %cst_136 = arith.constant 0.000000e+00 : f32
    %282 = vector.broadcast %cst_136 : f32 to vector<32x16xf32>
    %283 = arith.maximumf %281, %282 : vector<32x16xf32>
    %284 = vector.extract_strided_slice %276 {offsets = [0, 0], sizes = [16, 16], strides = [1, 1]} : vector<32x16xf32> to vector<16x16xf32>
    %cst_137 = arith.constant dense<0.000000e+00> : vector<16x16xf32>
    %285 = tpu.matmul %113, %284, %cst_137 {dimension_numbers = #tpu.dot_dimension_numbers<[1], [0], [0], [1], [0, 0, 1, 1], [], []>} : vector<16x16xf32>, vector<16x16xf32>, vector<16x16xf32> -> vector<16x16xf32>
    %286 = vector.extract_strided_slice %283 {offsets = [0, 0], sizes = [16, 16], strides = [1, 1]} : vector<32x16xf32> to vector<16x16xf32>
    %287 = arith.addf %285, %286 : vector<16x16xf32>
    %288 = arith.mulf %287, %287 : vector<16x16xf32>
    %cst_138 = arith.constant dense<0.000000e+00> : vector<16xf32>
    %289 = vector.multi_reduction <add>, %288, %cst_138 [1] : vector<16x16xf32> to vector<16xf32>
    %290 = vector.shape_cast %289 : vector<16xf32> to vector<16x1xf32>
    %cst_139 = arith.constant 1.000000e-24 : f32
    %291 = vector.broadcast %cst_139 : f32 to vector<16x1xf32>
    %292 = arith.maximumf %290, %291 : vector<16x1xf32>
    %293 = math.rsqrt %292 : vector<16x1xf32>
    %294 = vector.broadcast %293 : vector<16x1xf32> to vector<16x16xf32>
    %295 = arith.mulf %287, %294 : vector<16x16xf32>
    %296 = vector.extract_strided_slice %276 {offsets = [16, 0], sizes = [16, 16], strides = [1, 1]} : vector<32x16xf32> to vector<16x16xf32>
    %cst_140 = arith.constant dense<0.000000e+00> : vector<16x16xf32>
    %297 = tpu.matmul %122, %296, %cst_140 {dimension_numbers = #tpu.dot_dimension_numbers<[1], [0], [0], [1], [0, 0, 1, 1], [], []>} : vector<16x16xf32>, vector<16x16xf32>, vector<16x16xf32> -> vector<16x16xf32>
    %298 = vector.extract_strided_slice %283 {offsets = [16, 0], sizes = [16, 16], strides = [1, 1]} : vector<32x16xf32> to vector<16x16xf32>
    %299 = arith.addf %297, %298 : vector<16x16xf32>
    %300 = arith.mulf %299, %299 : vector<16x16xf32>
    %cst_141 = arith.constant dense<0.000000e+00> : vector<16xf32>
    %301 = vector.multi_reduction <add>, %300, %cst_141 [1] : vector<16x16xf32> to vector<16xf32>
    %302 = vector.shape_cast %301 : vector<16xf32> to vector<16x1xf32>
    %cst_142 = arith.constant 1.000000e-24 : f32
    %303 = vector.broadcast %cst_142 : f32 to vector<16x1xf32>
    %304 = arith.maximumf %302, %303 : vector<16x1xf32>
    %305 = math.rsqrt %304 : vector<16x1xf32>
    %306 = vector.broadcast %305 : vector<16x1xf32> to vector<16x16xf32>
    %307 = arith.mulf %299, %306 : vector<16x16xf32>
    %c0_143 = arith.constant 0 : index
    %c0_144 = arith.constant 0 : index
    %308 = vector.load %arg21[%c0_143, %c0_144] : memref<16x16xf32, #tpu.memory_space<vmem>>, vector<16x16xf32>
    %cst_145 = arith.constant dense<0.000000e+00> : vector<16x16xf32>
    %309 = tpu.matmul %295, %308, %cst_145 {dimension_numbers = #tpu.dot_dimension_numbers<[1], [0], [0], [1], [0, 0, 1, 1], [], []>} : vector<16x16xf32>, vector<16x16xf32>, vector<16x16xf32> -> vector<16x16xf32>
    %310 = tpu.transpose %307, [1, 0] : vector<16x16xf32> -> vector<16x16xf32>
    %cst_146 = arith.constant dense<0.000000e+00> : vector<16x16xf32>
    %311 = tpu.matmul %309, %310, %cst_146 {dimension_numbers = #tpu.dot_dimension_numbers<[1], [0], [0], [1], [0, 0, 1, 1], [], []>} : vector<16x16xf32>, vector<16x16xf32>, vector<16x16xf32> -> vector<16x16xf32>
    %312 = arith.mulf %311, %138 : vector<16x16xf32>
    %cst_147 = arith.constant 2.000000e+02 : f32
    %313 = vector.broadcast %cst_147 : f32 to vector<16x16xf32>
    %314 = arith.mulf %313, %312 : vector<16x16xf32>
    %cst_148 = arith.constant dense<0xFF800000> : vector<16xf32>
    %315 = vector.multi_reduction <maximumf>, %314, %cst_148 [1] : vector<16x16xf32> to vector<16xf32>
    %316 = vector.shape_cast %315 : vector<16xf32> to vector<16x1xf32>
    %317 = vector.broadcast %316 : vector<16x1xf32> to vector<16x16xf32>
    %318 = arith.subf %314, %317 : vector<16x16xf32>
    %319 = math.exp %318 : vector<16x16xf32>
    %cst_149 = arith.constant dense<0.000000e+00> : vector<16xf32>
    %320 = vector.multi_reduction <add>, %319, %cst_149 [1] : vector<16x16xf32> to vector<16xf32>
    %321 = vector.shape_cast %320 : vector<16xf32> to vector<16x1xf32>
    %322 = tpu.reciprocal %321 {approx = true} : vector<16x1xf32> -> vector<16x1xf32>
    %323 = vector.broadcast %322 : vector<16x1xf32> to vector<16x16xf32>
    %324 = arith.mulf %319, %323 : vector<16x16xf32>
    %cst_150 = arith.constant 9.99999974E-5 : f32
    %325 = vector.broadcast %cst_150 : f32 to vector<16x16xf32>
    %326 = arith.addf %324, %325 : vector<16x16xf32>
    %327 = arith.mulf %326, %138 : vector<16x16xf32>
    %cst_151 = arith.constant dense<0.000000e+00> : vector<16xf32>
    %328 = vector.multi_reduction <add>, %327, %cst_151 [0] : vector<16x16xf32> to vector<16xf32>
    %329 = vector.shape_cast %328 : vector<16xf32> to vector<1x16xf32>
    %330 = tpu.reciprocal %329 {approx = true} : vector<1x16xf32> -> vector<1x16xf32>
    %331 = vector.broadcast %330 : vector<1x16xf32> to vector<16x16xf32>
    %332 = arith.mulf %327, %331 : vector<16x16xf32>
    %cst_152 = arith.constant dense<0.000000e+00> : vector<16xf32>
    %333 = vector.multi_reduction <add>, %332, %cst_152 [1] : vector<16x16xf32> to vector<16xf32>
    %334 = vector.shape_cast %333 : vector<16xf32> to vector<16x1xf32>
    %335 = tpu.reciprocal %334 {approx = true} : vector<16x1xf32> -> vector<16x1xf32>
    %336 = vector.broadcast %335 : vector<16x1xf32> to vector<16x16xf32>
    %337 = arith.mulf %332, %336 : vector<16x16xf32>
    %cst_153 = arith.constant dense<0.000000e+00> : vector<16xf32>
    %338 = vector.multi_reduction <add>, %337, %cst_153 [0] : vector<16x16xf32> to vector<16xf32>
    %339 = vector.shape_cast %338 : vector<16xf32> to vector<1x16xf32>
    %340 = tpu.reciprocal %339 {approx = true} : vector<1x16xf32> -> vector<1x16xf32>
    %341 = vector.broadcast %340 : vector<1x16xf32> to vector<16x16xf32>
    %342 = arith.mulf %337, %341 : vector<16x16xf32>
    %cst_154 = arith.constant dense<0.000000e+00> : vector<16xf32>
    %343 = vector.multi_reduction <add>, %342, %cst_154 [1] : vector<16x16xf32> to vector<16xf32>
    %344 = vector.shape_cast %343 : vector<16xf32> to vector<16x1xf32>
    %345 = tpu.reciprocal %344 {approx = true} : vector<16x1xf32> -> vector<16x1xf32>
    %346 = vector.broadcast %345 : vector<16x1xf32> to vector<16x16xf32>
    %347 = arith.mulf %342, %346 : vector<16x16xf32>
    %cst_155 = arith.constant dense<0.000000e+00> : vector<16xf32>
    %348 = vector.multi_reduction <add>, %347, %cst_155 [0] : vector<16x16xf32> to vector<16xf32>
    %349 = vector.shape_cast %348 : vector<16xf32> to vector<1x16xf32>
    %350 = tpu.reciprocal %349 {approx = true} : vector<1x16xf32> -> vector<1x16xf32>
    %351 = vector.broadcast %350 : vector<1x16xf32> to vector<16x16xf32>
    %352 = arith.mulf %347, %351 : vector<16x16xf32>
    %cst_156 = arith.constant dense<0.000000e+00> : vector<16xf32>
    %353 = vector.multi_reduction <add>, %352, %cst_156 [1] : vector<16x16xf32> to vector<16xf32>
    %354 = vector.shape_cast %353 : vector<16xf32> to vector<16x1xf32>
    %355 = tpu.reciprocal %354 {approx = true} : vector<16x1xf32> -> vector<16x1xf32>
    %356 = vector.broadcast %355 : vector<16x1xf32> to vector<16x16xf32>
    %357 = arith.mulf %352, %356 : vector<16x16xf32>
    %cst_157 = arith.constant dense<0.000000e+00> : vector<16xf32>
    %358 = vector.multi_reduction <add>, %357, %cst_157 [0] : vector<16x16xf32> to vector<16xf32>
    %359 = vector.shape_cast %358 : vector<16xf32> to vector<1x16xf32>
    %360 = tpu.reciprocal %359 {approx = true} : vector<1x16xf32> -> vector<1x16xf32>
    %361 = vector.broadcast %360 : vector<1x16xf32> to vector<16x16xf32>
    %362 = arith.mulf %357, %361 : vector<16x16xf32>
    %cst_158 = arith.constant dense<0.000000e+00> : vector<16xf32>
    %363 = vector.multi_reduction <add>, %362, %cst_158 [1] : vector<16x16xf32> to vector<16xf32>
    %364 = vector.shape_cast %363 : vector<16xf32> to vector<16x1xf32>
    %365 = tpu.reciprocal %364 {approx = true} : vector<16x1xf32> -> vector<16x1xf32>
    %366 = vector.broadcast %365 : vector<16x1xf32> to vector<16x16xf32>
    %367 = arith.mulf %362, %366 : vector<16x16xf32>
    %cst_159 = arith.constant dense<0.000000e+00> : vector<16xf32>
    %368 = vector.multi_reduction <add>, %367, %cst_159 [0] : vector<16x16xf32> to vector<16xf32>
    %369 = vector.shape_cast %368 : vector<16xf32> to vector<1x16xf32>
    %370 = tpu.reciprocal %369 {approx = true} : vector<1x16xf32> -> vector<1x16xf32>
    %371 = vector.broadcast %370 : vector<1x16xf32> to vector<16x16xf32>
    %372 = arith.mulf %367, %371 : vector<16x16xf32>
    %cst_160 = arith.constant dense<0.000000e+00> : vector<16xf32>
    %373 = vector.multi_reduction <add>, %372, %cst_160 [1] : vector<16x16xf32> to vector<16xf32>
    %374 = vector.shape_cast %373 : vector<16xf32> to vector<16x1xf32>
    %375 = tpu.reciprocal %374 {approx = true} : vector<16x1xf32> -> vector<16x1xf32>
    %376 = vector.broadcast %375 : vector<16x1xf32> to vector<16x16xf32>
    %377 = arith.mulf %372, %376 : vector<16x16xf32>
    %c0_161 = arith.constant 0 : index
    %c0_162 = arith.constant 0 : index
    %378 = vector.load %arg25[%c0_161, %c0_162] : memref<16x16xf32, #tpu.memory_space<vmem>>, vector<16x16xf32>
    tpu.vector_store %arg25[%c0_161, %c0_162], %377 {strides = array<i32>} : memref<16x16xf32, #tpu.memory_space<vmem>>, vector<16x16xf32>,
    return
  }
}

</mosaic_0001>

<llo_original>
// kernel: net_forward.1
$region0: #{net_forward.1}
  #allocation0 [shape = 'u32[]', space=smem, size = 0x4, offset = 0x4, fixed_abs, tag = 'smem constant byte address 0x4 - core index']
  #allocation1 [shape = 'u32[72,128]{1,0:T(1,128)}', space=vmem, size = 0x9000, scoped, tag = 'internal scratch']
  #allocation2 [shape = 'f32[32,16]{1,0:T(8,128)}', space=vmem, size = 0x4000, scoped, tag = 'scratch operand']
  %s0 = inlined_call_operand.vmem [shape: f32[16,16], index: 0, kind: input, shape index: {}]
  %s1 = inlined_call_operand.vmem [shape: f32[16,16], index: 1, kind: input, shape index: {}]
  %s2 = inlined_call_operand.vmem [shape: f32[16,16], index: 2, kind: input, shape index: {}]
  %s3 = inlined_call_operand.hbm [shape: f32[16,16], index: 3, kind: input, shape index: {}]
  %s4 = inlined_call_operand.hbm [shape: f32[16,32], index: 4, kind: input, shape index: {}]
  %s5 = inlined_call_operand.hbm [shape: f32[1,32], index: 5, kind: input, shape index: {}]
  %s6 = inlined_call_operand.hbm [shape: f32[32,16], index: 6, kind: input, shape index: {}]
  %s7 = inlined_call_operand.hbm [shape: f32[1,16], index: 7, kind: input, shape index: {}]
  %s8 = inlined_call_operand.hbm [shape: f32[16,32], index: 8, kind: input, shape index: {}]
  %s9 = inlined_call_operand.hbm [shape: f32[1,32], index: 9, kind: input, shape index: {}]
  %s10 = inlined_call_operand.vmem [shape: f32[32,16], index: 10, kind: input, shape index: {}]
  %s11 = inlined_call_operand.hbm [shape: f32[1,16], index: 11, kind: input, shape index: {}]
  %s12 = inlined_call_operand.hbm [shape: f32[16,16], index: 12, kind: input, shape index: {}]
  %s13 = inlined_call_operand.hbm [shape: f32[1,16], index: 13, kind: input, shape index: {}]
  %s14 = inlined_call_operand.hbm [shape: f32[16,16], index: 14, kind: input, shape index: {}]
  %s15 = inlined_call_operand.vmem [shape: f32[1,16], index: 15, kind: input, shape index: {}]
  %s16 = inlined_call_operand.hbm [shape: f32[16,16], index: 16, kind: input, shape index: {}]
  %s17 = inlined_call_operand.hbm [shape: f32[16,16], index: 17, kind: input, shape index: {}]
  %s18 = inlined_call_operand.vmem [shape: f32[1,16], index: 18, kind: input, shape index: {}]
  %s19 = inlined_call_operand.hbm [shape: f32[16,16], index: 19, kind: input, shape index: {}]
  %s20 = inlined_call_operand.vmem [shape: f32[1,16], index: 20, kind: input, shape index: {}]
  %s21 = inlined_call_operand.hbm [shape: f32[16,16], index: 21, kind: input, shape index: {}]
  %s22 = inlined_call_operand.hbm [shape: f32[16,16], index: 22, kind: input, shape index: {}]
  %s23 = inlined_call_operand.vmem [shape: f32[16,16], index: 23, kind: input, shape index: {}]
  %s24 = inlined_call_operand.vmem [shape: f32[1,16], index: 24, kind: input, shape index: {}]
  %s25 = inlined_call_operand.hbm [shape: f32[16,16], index: 25, kind: output, shape index: {0}]
  %s26 = inlined_call_operand.hbm [shape: f32[8,8], index: 26, kind: output, shape index: {1}]
  %s27 = inlined_call_operand.hbm [shape: f32[8,8], index: 27, kind: output, shape index: {2}]
  %28 = xla_tuple %s25, %s26, %s27
  %s29 = sld [smem:[#allocation0]]
  $region190: #{net_forward.1} parent=0
    _
  %s31 = ssub.s32 1, %s29
  %s32 = scalar_select 0, %s31, %s29
  $region1: #{net_forward.1} parent=0
    #allocation3 [shape = 'u8[8192]{0}', space=vmem, size = 0x2000, scoped, tag = 'input window, operand 3, single buffered']
    #allocation4 [shape = 's32[1]{0}', space=sflag, size = 0x4, scoped, tag = 'scoped memory for net_forward.1']
    #allocation5 [shape = 's32[1]{0}', space=sflag, size = 0x4, scoped, tag = 'scoped memory for net_forward.1']
    #allocation6 [shape = 'u8[8192]{0}', space=vmem, size = 0x2000, scoped, tag = 'input window, operand 4, single buffered']
    #allocation7 [shape = 's32[1]{0}', space=sflag, size = 0x4, scoped, tag = 'scoped memory for net_forward.1']
    #allocation8 [shape = 'u8[512]{0}', space=vmem, size = 0x400, scoped, tag = 'input window, operand 5, single buffered']
    #allocation9 [shape = 'u8[16384]{0}', space=vmem, size = 0x4000, scoped, tag = 'input window, operand 6, single buffered']
    #allocation10 [shape = 's32[1]{0}', space=sflag, size = 0x4, scoped, tag = 'scoped memory for net_forward.1']
    #allocation11 [shape = 'u8[512]{0}', space=vmem, size = 0x400, scoped, tag = 'input window, operand 7, single buffered']
    #allocation12 [shape = 'u8[8192]{0}', space=vmem, size = 0x2000, scoped, tag = 'input window, operand 8, single buffered']
    #allocation13 [shape = 's32[1]{0}', space=sflag, size = 0x4, scoped, tag = 'scoped memory for net_forward.1']
    #allocation14 [shape = 'u8[512]{0}', space=vmem, size = 0x400, scoped, tag = 'input window, operand 9, single buffered']
    #allocation15 [shape = 'u8[512]{0}', space=vmem, size = 0x400, scoped, tag = 'input window, operand 11, single buffered']
    #allocation16 [shape = 's32[1]{0}', space=sflag, size = 0x4, scoped, tag = 'scoped memory for net_forward.1']
    #allocation17 [shape = 'u8[8192]{0}', space=vmem, size = 0x2000, scoped, tag = 'input window, operand 12, single buffered']
    #allocation18 [shape = 'u8[512]{0}', space=vmem, size = 0x400, scoped, tag = 'input window, operand 13, single buffered']
    #allocation19 [shape = 's32[1]{0}', space=sflag, size = 0x4, scoped, tag = 'scoped memory for net_forward.1']
    #allocation20 [shape = 'u8[8192]{0}', space=vmem, size = 0x2000, scoped, tag = 'input window, operand 14, single buffered']
    #allocation21 [shape = 'u8[8192]{0}', space=vmem, size = 0x2000, scoped, tag = 'input window, operand 16, single buffered']
    #allocation22 [shape = 's32[1]{0}', space=sflag, size = 0x4, scoped, tag = 'scoped memory for net_forward.1']
    #allocation23 [shape = 'u8[8192]{0}', space=vmem, size = 0x2000, scoped, tag = 'input window, operand 17, single buffered']
    #allocation24 [shape = 'u8[8192]{0}', space=vmem, size = 0x2000, scoped, tag = 'input window, operand 19, single buffered']
    #allocation25 [shape = 's32[1]{0}', space=sflag, size = 0x4, scoped, tag = 'scoped memory for net_forward.1']
    #allocation26 [shape = 'u8[8192]{0}', space=vmem, size = 0x2000, scoped, tag = 'input window, operand 21, single buffered']
    #allocation27 [shape = 'u8[8192]{0}', space=vmem, size = 0x2000, scoped, tag = 'input window, operand 22, single buffered']
    #allocation28 [shape = 's32[1]{0}', space=sflag, size = 0x4, scoped, tag = 'scoped memory for net_forward.1']
    #allocation29 [shape = 'u8[8192]{0}', space=vmem, size = 0x2000, scoped, tag = 'output window, operand 0, single buffered']
    #allocation30 [shape = 'u8[4096]{0}', space=vmem, size = 0x1000, scoped, tag = 'output window, operand 1, single buffered']
    #allocation31 [shape = 's32[1]{0}', space=sflag, size = 0x4, scoped, tag = 'scoped memory for net_forward.1']
    #allocation32 [shape = 'u8[4096]{0}', space=vmem, size = 0x1000, scoped, tag = 'output window, operand 2, single buffered']
    %33 = vsyncpa [#allocation4], 0
    %34 = vsyncpa [#allocation7], 0
    %35 = vsyncpa [#allocation10], 0
    %36 = vsyncpa [#allocation13], 0
    %37 = vsyncpa [#allocation16], 0
    %38 = vsyncpa [#allocation19], 0
    %39 = vsyncpa [#allocation22], 0
    %40 = vsyncpa [#allocation25], 0
    %41 = vsyncpa [#allocation28], 0
    %42 = vsyncpa [#allocation5], 0
    %43 = vsyncpa [#allocation31], 0
    // Predicated region
    $region2: #{net_forward.1} parent=1 // pred_check
      _
    $region3: #{net_forward.1} parent=1 // pred_check_branch
      %45 = sbr.rel (0) target = $region5
    $region4: #{net_forward.1} parent=1 // pred_region
      _
    $region5: #{net_forward.1} parent=1 // pred_fallthru
      _
    // Predicated region
    $region6: #{net_forward.1} parent=1 // pred_check
      _
    $region7: #{net_forward.1} parent=1 // pred_check_branch
      %47 = sbr.rel (0) target = $region9
    $region8: #{net_forward.1} parent=1 // pred_region
      _
    $region9: #{net_forward.1} parent=1 // pred_fallthru
      _
    // Predicated region
    $region10: #{net_forward.1} parent=1 // pred_check
      _
    $region11: #{net_forward.1} parent=1 // pred_check_branch
      %49 = sbr.rel (0) target = $region13
    $region12: #{net_forward.1} parent=1 // pred_region
      _
    $region13: #{net_forward.1} parent=1 // pred_fallthru
      _
    // Predicated region
    $region14: #{net_forward.1} parent=1 // pred_check
      _
    $region15: #{net_forward.1} parent=1 // pred_check_branch
      %51 = sbr.rel (0) target = $region17
    $region16: #{net_forward.1} parent=1 // pred_region
      %53 = vsyncadd [#allocation4], 0
      %s54 = sshll.u32 %s3, 4
      %s55 = int_to_ptr.hbm [resolvable:$true] %s54
      %s56 = sshll.u32 [#allocation3], 4
      %s57 = int_to_ptr.vmem [resolvable:$true] %s56
      %62 = dma.hbm_to_vmem [thread:$0]  %s55, 256, %s57, [#allocation4], 128, 128, 8
    $region17: #{net_forward.1} parent=1 // pred_fallthru
      _
    // Predicated region
    $region18: #{net_forward.1} parent=1 // pred_check
      _
    $region19: #{net_forward.1} parent=1 // pred_check_branch
      %64 = sbr.rel (0) target = $region21
    $region20: #{net_forward.1} parent=1 // pred_region
      %66 = vsyncadd [#allocation7], 0
      %s67 = sshll.u32 %s4, 4
      %s68 = int_to_ptr.hbm [resolvable:$true] %s67
      %s69 = sshll.u32 [#allocation6], 4
      %s70 = int_to_ptr.vmem [resolvable:$true] %s69
      %75 = dma.hbm_to_vmem [thread:$0]  %s68, 256, %s70, [#allocation7], 128, 128, 8
    $region21: #{net_forward.1} parent=1 // pred_fallthru
      _
    // Predicated region
    $region22: #{net_forward.1} parent=1 // pred_check
      _
    $region23: #{net_forward.1} parent=1 // pred_check_branch
      %77 = sbr.rel (0) target = $region25
    $region24: #{net_forward.1} parent=1 // pred_region
      %79 = vsyncadd [#allocation7], 0
      %s81 = sshll.u32 %s5, 4
      %s82 = int_to_ptr.hbm [resolvable:$true] %s81
      %s83 = sshll.u32 [#allocation8], 4
      %s84 = int_to_ptr.vmem [resolvable:$true] %s83
      %86 = dma.hbm_to_vmem [thread:$0]  %s82, 16, %s84, [#allocation7]
    $region25: #{net_forward.1} parent=1 // pred_fallthru
      _
    // Predicated region
    $region26: #{net_forward.1} parent=1 // pred_check
      _
    $region27: #{net_forward.1} parent=1 // pred_check_branch
      %88 = sbr.rel (0) target = $region29
    $region28: #{net_forward.1} parent=1 // pred_region
      %90 = vsyncadd [#allocation10], 0
      %s91 = sshll.u32 %s6, 4
      %s92 = int_to_ptr.hbm [resolvable:$true] %s91
      %s93 = sshll.u32 [#allocation9], 4
      %s94 = int_to_ptr.vmem [resolvable:$true] %s93
      %99 = dma.hbm_to_vmem [thread:$0]  %s92, 512, %s94, [#allocation10], 128, 128, 8
    $region29: #{net_forward.1} parent=1 // pred_fallthru
      _
    // Predicated region
    $region30: #{net_forward.1} parent=1 // pred_check
      _
    $region31: #{net_forward.1} parent=1 // pred_check_branch
      %101 = sbr.rel (0) target = $region33
    $region32: #{net_forward.1} parent=1 // pred_region
      %103 = vsyncadd [#allocation10], 0
      %s105 = sshll.u32 %s7, 4
      %s106 = int_to_ptr.hbm [resolvable:$true] %s105
      %s107 = sshll.u32 [#allocation11], 4
      %s108 = int_to_ptr.vmem [resolvable:$true] %s107
      %110 = dma.hbm_to_vmem [thread:$0]  %s106, 16, %s108, [#allocation10]
    $region33: #{net_forward.1} parent=1 // pred_fallthru
      _
    // Predicated region
    $region34: #{net_forward.1} parent=1 // pred_check
      _
    $region35: #{net_forward.1} parent=1 // pred_check_branch
      %112 = sbr.rel (0) target = $region37
    $region36: #{net_forward.1} parent=1 // pred_region
      %114 = vsyncadd [#allocation13], 0
      %s115 = sshll.u32 %s8, 4
      %s116 = int_to_ptr.hbm [resolvable:$true] %s115
      %s117 = sshll.u32 [#allocation12], 4
      %s118 = int_to_ptr.vmem [resolvable:$true] %s117
      %123 = dma.hbm_to_vmem [thread:$0]  %s116, 256, %s118, [#allocation13], 128, 128, 8
    $region37: #{net_forward.1} parent=1 // pred_fallthru
      _
    // Predicated region
    $region38: #{net_forward.1} parent=1 // pred_check
      _
    $region39: #{net_forward.1} parent=1 // pred_check_branch
      %125 = sbr.rel (0) target = $region41
    $region40: #{net_forward.1} parent=1 // pred_region
      %127 = vsyncadd [#allocation13], 0
      %s129 = sshll.u32 %s9, 4
      %s130 = int_to_ptr.hbm [resolvable:$true] %s129
      %s131 = sshll.u32 [#allocation14], 4
      %s132 = int_to_ptr.vmem [resolvable:$true] %s131
      %134 = dma.hbm_to_vmem [thread:$0]  %s130, 16, %s132, [#allocation13]
    $region41: #{net_forward.1} parent=1 // pred_fallthru
      _
    // Predicated region
    $region42: #{net_forward.1} parent=1 // pred_check
      _
    $region43: #{net_forward.1} parent=1 // pred_check_branch
      %136 = sbr.rel (0) target = $region45
    $region44: #{net_forward.1} parent=1 // pred_region
      _
    $region45: #{net_forward.1} parent=1 // pred_fallthru
      _
    // Predicated region
    $region46: #{net_forward.1} parent=1 // pred_check
      _
    $region47: #{net_forward.1} parent=1 // pred_check_branch
      %138 = sbr.rel (0) target = $region49
    $region48: #{net_forward.1} parent=1 // pred_region
      %140 = vsyncadd [#allocation16], 0
      %s142 = sshll.u32 %s11, 4
      %s143 = int_to_ptr.hbm [resolvable:$true] %s142
      %s144 = sshll.u32 [#allocation15], 4
      %s145 = int_to_ptr.vmem [resolvable:$true] %s144
      %147 = dma.hbm_to_vmem [thread:$0]  %s143, 16, %s145, [#allocation16]
    $region49: #{net_forward.1} parent=1 // pred_fallthru
      _
    // Predicated region
    $region50: #{net_forward.1} parent=1 // pred_check
      _
    $region51: #{net_forward.1} parent=1 // pred_check_branch
      %149 = sbr.rel (0) target = $region53
    $region52: #{net_forward.1} parent=1 // pred_region
      %151 = vsyncadd [#allocation16], 0
      %s152 = sshll.u32 %s12, 4
      %s153 = int_to_ptr.hbm [resolvable:$true] %s152
      %s154 = sshll.u32 [#allocation17], 4
      %s155 = int_to_ptr.vmem [resolvable:$true] %s154
      %160 = dma.hbm_to_vmem [thread:$0]  %s153, 256, %s155, [#allocation16], 128, 128, 8
    $region53: #{net_forward.1} parent=1 // pred_fallthru
      _
    // Predicated region
    $region54: #{net_forward.1} parent=1 // pred_check
      _
    $region55: #{net_forward.1} parent=1 // pred_check_branch
      %162 = sbr.rel (0) target = $region57
    $region56: #{net_forward.1} parent=1 // pred_region
      %164 = vsyncadd [#allocation19], 0
      %s166 = sshll.u32 %s13, 4
      %s167 = int_to_ptr.hbm [resolvable:$true] %s166
      %s168 = sshll.u32 [#allocation18], 4
      %s169 = int_to_ptr.vmem [resolvable:$true] %s168
      %171 = dma.hbm_to_vmem [thread:$0]  %s167, 16, %s169, [#allocation19]
    $region57: #{net_forward.1} parent=1 // pred_fallthru
      _
    // Predicated region
    $region58: #{net_forward.1} parent=1 // pred_check
      _
    $region59: #{net_forward.1} parent=1 // pred_check_branch
      %173 = sbr.rel (0) target = $region61
    $region60: #{net_forward.1} parent=1 // pred_region
      %175 = vsyncadd [#allocation19], 0
      %s176 = sshll.u32 %s14, 4
      %s177 = int_to_ptr.hbm [resolvable:$true] %s176
      %s178 = sshll.u32 [#allocation20], 4
      %s179 = int_to_ptr.vmem [resolvable:$true] %s178
      %184 = dma.hbm_to_vmem [thread:$0]  %s177, 256, %s179, [#allocation19], 128, 128, 8
    $region61: #{net_forward.1} parent=1 // pred_fallthru
      _
    // Predicated region
    $region62: #{net_forward.1} parent=1 // pred_check
      _
    $region63: #{net_forward.1} parent=1 // pred_check_branch
      %186 = sbr.rel (0) target = $region65
    $region64: #{net_forward.1} parent=1 // pred_region
      _
    $region65: #{net_forward.1} parent=1 // pred_fallthru
      _
    // Predicated region
    $region66: #{net_forward.1} parent=1 // pred_check
      _
    $region67: #{net_forward.1} parent=1 // pred_check_branch
      %188 = sbr.rel (0) target = $region69
    $region68: #{net_forward.1} parent=1 // pred_region
      %190 = vsyncadd [#allocation22], 0
      %s191 = sshll.u32 %s16, 4
      %s192 = int_to_ptr.hbm [resolvable:$true] %s191
      %s193 = sshll.u32 [#allocation21], 4
      %s194 = int_to_ptr.vmem [resolvable:$true] %s193
      %199 = dma.hbm_to_vmem [thread:$0]  %s192, 256, %s194, [#allocation22], 128, 128, 8
    $region69: #{net_forward.1} parent=1 // pred_fallthru
      _
    // Predicated region
    $region70: #{net_forward.1} parent=1 // pred_check
      _
    $region71: #{net_forward.1} parent=1 // pred_check_branch
      %201 = sbr.rel (0) target = $region73
    $region72: #{net_forward.1} parent=1 // pred_region
      %203 = vsyncadd [#allocation22], 0
      %s204 = sshll.u32 %s17, 4
      %s205 = int_to_ptr.hbm [resolvable:$true] %s204
      %s206 = sshll.u32 [#allocation23], 4
      %s207 = int_to_ptr.vmem [resolvable:$true] %s206
      %212 = dma.hbm_to_vmem [thread:$0]  %s205, 256, %s207, [#allocation22], 128, 128, 8
    $region73: #{net_forward.1} parent=1 // pred_fallthru
      _
    // Predicated region
    $region74: #{net_forward.1} parent=1 // pred_check
      _
    $region75: #{net_forward.1} parent=1 // pred_check_branch
      %214 = sbr.rel (0) target = $region77
    $region76: #{net_forward.1} parent=1 // pred_region
      _
    $region77: #{net_forward.1} parent=1 // pred_fallthru
      _
    // Predicated region
    $region78: #{net_forward.1} parent=1 // pred_check
      _
    $region79: #{net_forward.1} parent=1 // pred_check_branch
      %216 = sbr.rel (0) target = $region81
    $region80: #{net_forward.1} parent=1 // pred_region
      %218 = vsyncadd [#allocation25], 0
      %s219 = sshll.u32 %s19, 4
      %s220 = int_to_ptr.hbm [resolvable:$true] %s219
      %s221 = sshll.u32 [#allocation24], 4
      %s222 = int_to_ptr.vmem [resolvable:$true] %s221
      %227 = dma.hbm_to_vmem [thread:$0]  %s220, 256, %s222, [#allocation25], 128, 128, 8
    $region81: #{net_forward.1} parent=1 // pred_fallthru
      _
    // Predicated region
    $region82: #{net_forward.1} parent=1 // pred_check
      _
    $region83: #{net_forward.1} parent=1 // pred_check_branch
      %229 = sbr.rel (0) target = $region85
    $region84: #{net_forward.1} parent=1 // pred_region
      _
    $region85: #{net_forward.1} parent=1 // pred_fallthru
      _
    // Predicated region
    $region86: #{net_forward.1} parent=1 // pred_check
      _
    $region87: #{net_forward.1} parent=1 // pred_check_branch
      %231 = sbr.rel (0) target = $region89
    $region88: #{net_forward.1} parent=1 // pred_region
      %233 = vsyncadd [#allocation25], 0
      %s234 = sshll.u32 %s21, 4
      %s235 = int_to_ptr.hbm [resolvable:$true] %s234
      %s236 = sshll.u32 [#allocation26], 4
      %s237 = int_to_ptr.vmem [resolvable:$true] %s236
      %242 = dma.hbm_to_vmem [thread:$0]  %s235, 256, %s237, [#allocation25], 128, 128, 8
    $region89: #{net_forward.1} parent=1 // pred_fallthru
      _
    // Predicated region
    $region90: #{net_forward.1} parent=1 // pred_check
      _
    $region91: #{net_forward.1} parent=1 // pred_check_branch
      %244 = sbr.rel (0) target = $region93
    $region92: #{net_forward.1} parent=1 // pred_region
      %246 = vsyncadd [#allocation28], 0
      %s247 = sshll.u32 %s22, 4
      %s248 = int_to_ptr.hbm [resolvable:$true] %s247
      %s249 = sshll.u32 [#allocation27], 4
      %s250 = int_to_ptr.vmem [resolvable:$true] %s249
      %255 = dma.hbm_to_vmem [thread:$0]  %s248, 256, %s250, [#allocation28], 128, 128, 8
    $region93: #{net_forward.1} parent=1 // pred_fallthru
      _
    // Predicated region
    $region94: #{net_forward.1} parent=1 // pred_check
      _
    $region95: #{net_forward.1} parent=1 // pred_check_branch
      %257 = sbr.rel (0) target = $region97
    $region96: #{net_forward.1} parent=1 // pred_region
      _
    $region97: #{net_forward.1} parent=1 // pred_fallthru
      _
    // Predicated region
    $region98: #{net_forward.1} parent=1 // pred_check
      _
    $region99: #{net_forward.1} parent=1 // pred_check_branch
      %259 = sbr.rel (0) target = $region101
    $region100: #{net_forward.1} parent=1 // pred_region
      _
    $region101: #{net_forward.1} parent=1 // pred_fallthru
      _
    // Predicated region
    $region102: #{net_forward.1} parent=1 // pred_check
      _
    $region103: #{net_forward.1} parent=1 // pred_check_branch
      %261 = sbr.rel (0) target = $region105
    $region104: #{net_forward.1} parent=1 // pred_region
      %263 = dma.done [#allocation4], 256
    $region105: #{net_forward.1} parent=1 // pred_fallthru
      _
    // Predicated region
    $region106: #{net_forward.1} parent=1 // pred_check
      _
    $region107: #{net_forward.1} parent=1 // pred_check_branch
      %265 = sbr.rel (0) target = $region109
    $region108: #{net_forward.1} parent=1 // pred_region
      %267 = dma.done [#allocation7], 256
    $region109: #{net_forward.1} parent=1 // pred_fallthru
      _
    // Predicated region
    $region110: #{net_forward.1} parent=1 // pred_check
      _
    $region111: #{net_forward.1} parent=1 // pred_check_branch
      %269 = sbr.rel (0) target = $region113
    $region112: #{net_forward.1} parent=1 // pred_region
      %271 = dma.done [#allocation7], 16
    $region113: #{net_forward.1} parent=1 // pred_fallthru
      _
    // Predicated region
    $region114: #{net_forward.1} parent=1 // pred_check
      _
    $region115: #{net_forward.1} parent=1 // pred_check_branch
      %273 = sbr.rel (0) target = $region117
    $region116: #{net_forward.1} parent=1 // pred_region
      %275 = dma.done [#allocation10], 512
    $region117: #{net_forward.1} parent=1 // pred_fallthru
      _
    // Predicated region
    $region118: #{net_forward.1} parent=1 // pred_check
      _
    $region119: #{net_forward.1} parent=1 // pred_check_branch
      %277 = sbr.rel (0) target = $region121
    $region120: #{net_forward.1} parent=1 // pred_region
      %279 = dma.done [#allocation10], 16
    $region121: #{net_forward.1} parent=1 // pred_fallthru
      _
    // Predicated region
    $region122: #{net_forward.1} parent=1 // pred_check
      _
    $region123: #{net_forward.1} parent=1 // pred_check_branch
      %281 = sbr.rel (0) target = $region125
    $region124: #{net_forward.1} parent=1 // pred_region
      %283 = dma.done [#allocation13], 256
    $region125: #{net_forward.1} parent=1 // pred_fallthru
      _
    // Predicated region
    $region126: #{net_forward.1} parent=1 // pred_check
      _
    $region127: #{net_forward.1} parent=1 // pred_check_branch
      %285 = sbr.rel (0) target = $region129
    $region128: #{net_forward.1} parent=1 // pred_region
      %287 = dma.done [#allocation13], 16
    $region129: #{net_forward.1} parent=1 // pred_fallthru
      _
    // Predicated region
    $region130: #{net_forward.1} parent=1 // pred_check
      _
    $region131: #{net_forward.1} parent=1 // pred_check_branch
      %289 = sbr.rel (0) target = $region133
    $region132: #{net_forward.1} parent=1 // pred_region
      %291 = dma.done [#allocation16], 16
    $region133: #{net_forward.1} parent=1 // pred_fallthru
      _
    // Predicated region
    $region134: #{net_forward.1} parent=1 // pred_check
      _
    $region135: #{net_forward.1} parent=1 // pred_check_branch
      %293 = sbr.rel (0) target = $region137
    $region136: #{net_forward.1} parent=1 // pred_region
      %295 = dma.done [#allocation16], 256
    $region137: #{net_forward.1} parent=1 // pred_fallthru
      _
    // Predicated region
    $region138: #{net_forward.1} parent=1 // pred_check
      _
    $region139: #{net_forward.1} parent=1 // pred_check_branch
      %297 = sbr.rel (0) target = $region141
    $region140: #{net_forward.1} parent=1 // pred_region
      %299 = dma.done [#allocation19], 16
    $region141: #{net_forward.1} parent=1 // pred_fallthru
      _
    // Predicated region
    $region142: #{net_forward.1} parent=1 // pred_check
      _
    $region143: #{net_forward.1} parent=1 // pred_check_branch
      %301 = sbr.rel (0) target = $region145
    $region144: #{net_forward.1} parent=1 // pred_region
      %303 = dma.done [#allocation19], 256
    $region145: #{net_forward.1} parent=1 // pred_fallthru
      _
    // Predicated region
    $region146: #{net_forward.1} parent=1 // pred_check
      _
    $region147: #{net_forward.1} parent=1 // pred_check_branch
      %305 = sbr.rel (0) target = $region149
    $region148: #{net_forward.1} parent=1 // pred_region
      %307 = dma.done [#allocation22], 256
    $region149: #{net_forward.1} parent=1 // pred_fallthru
      _
    // Predicated region
    $region150: #{net_forward.1} parent=1 // pred_check
      _
    $region151: #{net_forward.1} parent=1 // pred_check_branch
      %309 = sbr.rel (0) target = $region153
    $region152: #{net_forward.1} parent=1 // pred_region
      %311 = dma.done [#allocation22], 256
    $region153: #{net_forward.1} parent=1 // pred_fallthru
      _
    // Predicated region
    $region154: #{net_forward.1} parent=1 // pred_check
      _
    $region155: #{net_forward.1} parent=1 // pred_check_branch
      %313 = sbr.rel (0) target = $region157
    $region156: #{net_forward.1} parent=1 // pred_region
      %315 = dma.done [#allocation25], 256
    $region157: #{net_forward.1} parent=1 // pred_fallthru
      _
    // Predicated region
    $region158: #{net_forward.1} parent=1 // pred_check
      _
    $region159: #{net_forward.1} parent=1 // pred_check_branch
      %317 = sbr.rel (0) target = $region161
    $region160: #{net_forward.1} parent=1 // pred_region
      %319 = dma.done [#allocation25], 256
    $region161: #{net_forward.1} parent=1 // pred_fallthru
      _
    // Predicated region
    $region162: #{net_forward.1} parent=1 // pred_check
      _
    $region163: #{net_forward.1} parent=1 // pred_check_branch
      %321 = sbr.rel (0) target = $region165
    $region164: #{net_forward.1} parent=1 // pred_region
      %323 = dma.done [#allocation28], 256
    $region165: #{net_forward.1} parent=1 // pred_fallthru
      _
    %v324 = vld [vmem:[%s0] sm:$0xff]
    %v325 = vld [vmem:[%s0 + $0x8] sm:$0xff]
    %v326 = vld [vmem:[#allocation6] sm:$0xff]
    %v327 = vld [vmem:[#allocation6 + $0x8] sm:$0xff]
    %v328 = vld [vmem:[#allocation8] sm:$0x1]
    %v329 = vld [vmem:[#allocation9] sm:$0xff]
    %v330 = vld [vmem:[#allocation9 + $0x8] sm:$0xff]
    %v331 = vld [vmem:[#allocation9 + $0x10] sm:$0xff]
    %v332 = vld [vmem:[#allocation9 + $0x18] sm:$0xff]
    %v333 = vld [vmem:[#allocation11] sm:$0x1]
    %v335 = vperm.slane %v328, 0
    %vm337 = vcmask 130048
    %v339 = vsel %vm337, %v324, 0
    %v342 = vsel %vm337, %v325, 0
    %344 = vmatpush.msra.mxu0 0.0
    %345 = vmatpush.msra.mxu0 0.0
    %346 = vmatpush.msra.mxu0 0.0
    %347 = vmatpush.msra.mxu0 0.0
    %348 = vmatpush.msra.mxu0 0.0
    %349 = vmatpush.msra.mxu0 0.0
    %350 = vmatpush.msra.mxu0 0.0
    %351 = vmatpush.msra.mxu0 0.0
    %352 = vmatpush.msra.mxu0 0.0
    %353 = vmatpush.msra.mxu0 0.0
    %354 = vmatpush.msra.mxu0 0.0
    %355 = vmatpush.msra.mxu0 0.0
    %356 = vmatpush.msra.mxu0 0.0
    %357 = vmatpush.msra.mxu0 0.0
    %358 = vmatpush.msra.mxu0 %v327
    %359 = vmatpush.msra.mxu0 %v326
    %360 = vmatmul.f32.gmra.mxu0 %v339
    %v361 = vpop.f32.mrf.mxu0
    %v362 = vadd.f32 %v335, %v361
    %363 = vmatmul.f32.gmra.mxu0 %v342
    %v364 = vpop.f32.mrf.mxu0
    %v365 = vadd.f32 %v335, %v364
    %366 = vdwg.mxu0
    %v367 = vmax.f32 %v362, 0.0
    %v368 = vmax.f32 %v365, 0.0
    %v370 = vperm.slane %v333, 0
    %vm372 = vcmask 261120
    %v374 = vsel %vm372, %v367, 0
    %v377 = vsel %vm372, %v368, 0
    %379 = vmatpush.msra.mxu0 0.0
    %380 = vmatpush.msra.mxu0 0.0
    %381 = vmatpush.msra.mxu0 0.0
    %382 = vmatpush.msra.mxu0 0.0
    %383 = vmatpush.msra.mxu0 0.0
    %384 = vmatpush.msra.mxu0 0.0
    %385 = vmatpush.msra.mxu0 0.0
    %386 = vmatpush.msra.mxu0 0.0
    %387 = vmatpush.msra.mxu0 0.0
    %388 = vmatpush.msra.mxu0 0.0
    %389 = vmatpush.msra.mxu0 0.0
    %390 = vmatpush.msra.mxu0 0.0
    %391 = vmatpush.msra.mxu0 %v332
    %392 = vmatpush.msra.mxu0 %v331
    %393 = vmatpush.msra.mxu0 %v330
    %394 = vmatpush.msra.mxu0 %v329
    %395 = vmatmul.f32.gmra.mxu0 %v374
    %v396 = vpop.f32.mrf.mxu0
    %v397 = vadd.f32 %v370, %v396
    %398 = vmatmul.f32.gmra.mxu0 %v377
    %v399 = vpop.f32.mrf.mxu0
    %v400 = vadd.f32 %v370, %v399
    %401 = vdwg.mxu0
    %v402 = vmul.f32 %v397, %v397
    %v403 = vmul.f32 %v400, %v400
    %v404 = vsel %vm337, %v402, 0.0
    %405 = vadd.xlane.f32.xlu0 %v404
    %v406 = vpop.xlane.xlu0 %405
    %v407 = vsel %vm337, %v403, 0.0
    %408 = vadd.xlane.f32.xlu0 %v407
    %v409 = vpop.xlane.xlu0 %408
    %v410 = vmax.f32 %v406, 1e-24
    %v411 = vmax.f32 %v409, 1e-24
    %v412 = vrsqrt.pop %v410
    %v413 = vmul.f32 %v412, %v410
    %v414 = vmul.f32 %v413, %v412
    %v415 = vmul.f32 0.5, %v414
    %v416 = vsub.f32 1.5, %v415
    %v417 = vmul.f32 %v412, %v416
    %vm418 = vweird.f32 %v410
    %vm419 = vweird.f32 %v412
    %vm420 = vmor %vm418, %vm419
    %v421 = vsel %vm420, %v412, %v417
    %v422 = vrsqrt.pop %v411
    %v423 = vmul.f32 %v422, %v411
    %v424 = vmul.f32 %v423, %v422
    %v425 = vmul.f32 0.5, %v424
    %v426 = vsub.f32 1.5, %v425
    %v427 = vmul.f32 %v422, %v426
    %vm428 = vweird.f32 %v411
    %vm429 = vweird.f32 %v422
    %vm430 = vmor %vm428, %vm429
    %v431 = vsel %vm430, %v422, %v427
    %v432 = vmul.f32 %v397, %v421
    %v433 = vmul.f32 %v400, %v431
    %v434 = vmul.f32 %v432, %v432
    %v435 = vsel %vm337, %v434, 0.0
    %436 = vadd.xlane.f32.xlu0 %v435
    %v437 = vpop.xlane.xlu0 %436
    %v438 = vmul.f32 %v433, %v433
    %v439 = vsel %vm337, %v438, 0.0
    %440 = vadd.xlane.f32.xlu0 %v439
    %v441 = vpop.xlane.xlu0 %440
    %442 = vxpose.xlu0.b32.start [1/16] %v441, 128
    %443 = vxpose.xlu0.b32.cont [2/16] 0.0, 128
    %444 = vxpose.xlu0.b32.cont [3/16] 0.0, 128
    %445 = vxpose.xlu0.b32.cont [4/16] 0.0, 128
    %446 = vxpose.xlu0.b32.cont [5/16] 0.0, 128
    %447 = vxpose.xlu0.b32.cont [6/16] 0.0, 128
    %448 = vxpose.xlu0.b32.cont [7/16] 0.0, 128
    %449 = vxpose.xlu0.b32.cont [8/16] 0.0, 128
    %450 = vxpose.xlu0.b32.cont [9/16] 0.0, 128
    %451 = vxpose.xlu0.b32.cont [10/16] 0.0, 128
    %452 = vxpose.xlu0.b32.cont [11/16] 0.0, 128
    %453 = vxpose.xlu0.b32.cont [12/16] 0.0, 128
    %454 = vxpose.xlu0.b32.cont [13/16] 0.0, 128
    %455 = vxpose.xlu0.b32.cont [14/16] 0.0, 128
    %456 = vxpose.xlu0.b32.cont [15/16] 0.0, 128
    %457 = vxpose.xlu0.b32.end [16/16] 0.0, 128
    %v458 = vpop.trf.xlu0
    %v459 = vpop.trf.xlu0
    %v460 = vpop.trf.xlu0
    %v461 = vpop.trf.xlu0
    %v462 = vpop.trf.xlu0
    %v463 = vpop.trf.xlu0
    %v464 = vpop.trf.xlu0
    %v465 = vpop.trf.xlu0
    %v466 = vpop.trf.xlu0
    %v467 = vpop.trf.xlu0
    %v468 = vpop.trf.xlu0
    %v469 = vpop.trf.xlu0
    %v470 = vpop.trf.xlu0
    %v471 = vpop.trf.xlu0
    %v472 = vpop.trf.xlu0
    %v473 = vpop.trf.xlu0
    %v474 = vperm.slane %v458, 0
    %v475 = vadd.f32 %v437, %v474
    %v477 = vsel %vm337, %v432, 0
    %v480 = vsel %vm337, %v433, 0
    %482 = vmatpush.xpose.msra.mxu0 0.0
    %483 = vmatpush.xpose.msra.mxu0 0.0
    %484 = vmatpush.xpose.msra.mxu0 0.0
    %485 = vmatpush.xpose.msra.mxu0 0.0
    %486 = vmatpush.xpose.msra.mxu0 0.0
    %487 = vmatpush.xpose.msra.mxu0 0.0
    %488 = vmatpush.xpose.msra.mxu0 0.0
    %489 = vmatpush.xpose.msra.mxu0 0.0
    %490 = vmatpush.xpose.msra.mxu0 0.0
    %491 = vmatpush.xpose.msra.mxu0 0.0
    %492 = vmatpush.xpose.msra.mxu0 0.0
    %493 = vmatpush.xpose.msra.mxu0 0.0
    %494 = vmatpush.xpose.msra.mxu0 0.0
    %495 = vmatpush.xpose.msra.mxu0 0.0
    %496 = vmatpush.xpose.msra.mxu0 0.0
    %497 = vmatpush.xpose.msra.mxu0 %v480
    %498 = vmatmul.f32.gmra.mxu0 %v477
    %v499 = vpop.f32.mrf.mxu0
    %v500 = vadd.f32 0.0, %v499
    %501 = vdwg.mxu0
    %v502 = vmul.f32 %v500, 2.0
    %v503 = vsub.f32 %v475, %v502
    %v504 = vmax.f32 %v503, 0.0
    %v505 = vrsqrt.pop %v504
    %v506 = vmul.f32 %v505, %v504
    %v507 = vmul.f32 %v506, %v505
    %v508 = vmul.f32 0.5, %v507
    %v509 = vsub.f32 1.5, %v508
    %v510 = vmul.f32 %v505, %v509
    %v511 = vmul.f32 %v504, %v510
    %vm512 = vcmp.eq.f32.partialorder %v504, inf
    %v513 = vsel %vm512, %v504, %v511
    %vm514 = vcmp.eq.f32.partialorder %v504, 0.0
    %v515 = vand.u32 %v504, 2147483648
    %v516 = vsel %vm514, %v515, %v513
    %vm517 = vcmask 64512
    %v518 = vsel %vm517, %v516, -inf
    %519 = vmax.xlane.f32.xlu0 %v518
    %v520 = vpop.xlane.xlu0 %519
    %v521 = vrot.slane %v520, 4
    %v522 = vmax.f32 %v520, %v521
    %v523 = vrot.slane %v522, 2
    %v524 = vmax.f32 %v522, %v523
    %v525 = vrot.slane %v524, 1
    %v526 = vmax.f32 %v524, %v525
    %s527 = vtos %v526
    %v528 = vstv %s527
    %v529 = vrcp.pop %v528
    %v530 = vmul.f32 %v516, %v529
    %v531 = vsub.f32 1.0, %v530
    %532 = vst.msk [vmem:[#allocation30] sm:$0xff] %vm517, %v531
    %v533 = vld [vmem:[%s1] sm:$0xff]
    %v534 = vld [vmem:[%s1 + $0x8] sm:$0xff]
    %v535 = vld [vmem:[#allocation12] sm:$0xff]
    %v536 = vld [vmem:[#allocation12 + $0x8] sm:$0xff]
    %v537 = vld [vmem:[#allocation14] sm:$0x1]
    %v538 = vld [vmem:[%s10] sm:$0xff]
    %v539 = vld [vmem:[%s10 + $0x8] sm:$0xff]
    %v540 = vld [vmem:[%s10 + $0x10] sm:$0xff]
    %v541 = vld [vmem:[%s10 + $0x18] sm:$0xff]
    %v542 = vld [vmem:[#allocation15] sm:$0x1]
    %v544 = vperm.slane %v537, 0
    %v547 = vsel %vm337, %v533, 0
    %v550 = vsel %vm337, %v534, 0
    %552 = vmatpush.msra.mxu0 0.0
    %553 = vmatpush.msra.mxu0 0.0
    %554 = vmatpush.msra.mxu0 0.0
    %555 = vmatpush.msra.mxu0 0.0
    %556 = vmatpush.msra.mxu0 0.0
    %557 = vmatpush.msra.mxu0 0.0
    %558 = vmatpush.msra.mxu0 0.0
    %559 = vmatpush.msra.mxu0 0.0
    %560 = vmatpush.msra.mxu0 0.0
    %561 = vmatpush.msra.mxu0 0.0
    %562 = vmatpush.msra.mxu0 0.0
    %563 = vmatpush.msra.mxu0 0.0
    %564 = vmatpush.msra.mxu0 0.0
    %565 = vmatpush.msra.mxu0 0.0
    %566 = vmatpush.msra.mxu0 %v536
    %567 = vmatpush.msra.mxu0 %v535
    %568 = vmatmul.f32.gmra.mxu0 %v547
    %v569 = vpop.f32.mrf.mxu0
    %v570 = vadd.f32 %v544, %v569
    %571 = vmatmul.f32.gmra.mxu0 %v550
    %v572 = vpop.f32.mrf.mxu0
    %v573 = vadd.f32 %v544, %v572
    %574 = vdwg.mxu0
    %v575 = vmax.f32 %v570, 0.0
    %v576 = vmax.f32 %v573, 0.0
    %v578 = vperm.slane %v542, 0
    %v581 = vsel %vm372, %v575, 0
    %v584 = vsel %vm372, %v576, 0
    %586 = vmatpush.msra.mxu0 0.0
    %587 = vmatpush.msra.mxu0 0.0
    %588 = vmatpush.msra.mxu0 0.0
    %589 = vmatpush.msra.mxu0 0.0
    %590 = vmatpush.msra.mxu0 0.0
    %591 = vmatpush.msra.mxu0 0.0
    %592 = vmatpush.msra.mxu0 0.0
    %593 = vmatpush.msra.mxu0 0.0
    %594 = vmatpush.msra.mxu0 0.0
    %595 = vmatpush.msra.mxu0 0.0
    %596 = vmatpush.msra.mxu0 0.0
    %597 = vmatpush.msra.mxu0 0.0
    %598 = vmatpush.msra.mxu0 %v541
    %599 = vmatpush.msra.mxu0 %v540
    %600 = vmatpush.msra.mxu0 %v539
    %601 = vmatpush.msra.mxu0 %v538
    %602 = vmatmul.f32.gmra.mxu0 %v581
    %v603 = vpop.f32.mrf.mxu0
    %v604 = vadd.f32 %v578, %v603
    %605 = vmatmul.f32.gmra.mxu0 %v584
    %v606 = vpop.f32.mrf.mxu0
    %v607 = vadd.f32 %v578, %v606
    %608 = vdwg.mxu0
    %v609 = vxor.u32 %v604, 2147483648
    %v610 = vxor.u32 %v607, 2147483648
    %v611 = vmul.f32 %v609, 1.442695
    %v612 = vpow.pop %v611
    %v613 = vmul.f32 %v610, 1.442695
    %v614 = vpow.pop %v613
    %v615 = vadd.f32 %v612, 1.0
    %v616 = vadd.f32 %v614, 1.0
    %v617 = vrcp.pop %v615
    %v618 = vmul.f32 %v615, %v617
    %v619 = vsub.f32 1.0, %v618
    %v620 = vmul.f32 %v617, %v619
    %v621 = vadd.f32 %v617, %v620
    %vm622 = vweird.f32 %v615
    %vm623 = vweird.f32 %v617
    %vm624 = vmor %vm622, %vm623
    %v625 = vsel %vm624, %v617, %v621
    %v626 = vand.u32 2147483647, %v615
    %vm627 = vcmp.eq.f32.partialorder %v626, 8.507059e+37
    %v628 = vand.u32 %v615, 2147483648
    %v629 = vor.u32 1.1754944e-38, %v628
    %v630 = vsel %vm627, %v629, %v625
    %v631 = vmul.f32 1.0, %v630
    %v632 = vrcp.pop %v616
    %v633 = vmul.f32 %v616, %v632
    %v634 = vsub.f32 1.0, %v633
    %v635 = vmul.f32 %v632, %v634
    %v636 = vadd.f32 %v632, %v635
    %vm637 = vweird.f32 %v616
    %vm638 = vweird.f32 %v632
    %vm639 = vmor %vm637, %vm638
    %v640 = vsel %vm639, %v632, %v636
    %v641 = vand.u32 2147483647, %v616
    %vm642 = vcmp.eq.f32.partialorder %v641, 8.507059e+37
    %v643 = vand.u32 %v616, 2147483648
    %v644 = vor.u32 1.1754944e-38, %v643
    %v645 = vsel %vm642, %v644, %v640
    %v646 = vmul.f32 1.0, %v645
    %v647 = vmul.f32 %v631, %v631
    %v648 = vsel %vm337, %v647, 0.0
    %649 = vadd.xlane.f32.xlu0 %v648
    %v650 = vpop.xlane.xlu0 %649
    %v651 = vmul.f32 %v646, %v646
    %v652 = vsel %vm337, %v651, 0.0
    %653 = vadd.xlane.f32.xlu0 %v652
    %v654 = vpop.xlane.xlu0 %653
    %655 = vxpose.xlu0.b32.start [1/16] %v654, 128
    %656 = vxpose.xlu0.b32.cont [2/16] 0.0, 128
    %657 = vxpose.xlu0.b32.cont [3/16] 0.0, 128
    %658 = vxpose.xlu0.b32.cont [4/16] 0.0, 128
    %659 = vxpose.xlu0.b32.cont [5/16] 0.0, 128
    %660 = vxpose.xlu0.b32.cont [6/16] 0.0, 128
    %661 = vxpose.xlu0.b32.cont [7/16] 0.0, 128
    %662 = vxpose.xlu0.b32.cont [8/16] 0.0, 128
    %663 = vxpose.xlu0.b32.cont [9/16] 0.0, 128
    %664 = vxpose.xlu0.b32.cont [10/16] 0.0, 128
    %665 = vxpose.xlu0.b32.cont [11/16] 0.0, 128
    %666 = vxpose.xlu0.b32.cont [12/16] 0.0, 128
    %667 = vxpose.xlu0.b32.cont [13/16] 0.0, 128
    %668 = vxpose.xlu0.b32.cont [14/16] 0.0, 128
    %669 = vxpose.xlu0.b32.cont [15/16] 0.0, 128
    %670 = vxpose.xlu0.b32.end [16/16] 0.0, 128
    %v671 = vpop.trf.xlu0
    %v672 = vpop.trf.xlu0
    %v673 = vpop.trf.xlu0
    %v674 = vpop.trf.xlu0
    %v675 = vpop.trf.xlu0
    %v676 = vpop.trf.xlu0
    %v677 = vpop.trf.xlu0
    %v678 = vpop.trf.xlu0
    %v679 = vpop.trf.xlu0
    %v680 = vpop.trf.xlu0
    %v681 = vpop.trf.xlu0
    %v682 = vpop.trf.xlu0
    %v683 = vpop.trf.xlu0
    %v684 = vpop.trf.xlu0
    %v685 = vpop.trf.xlu0
    %v686 = vpop.trf.xlu0
    %v687 = vperm.slane %v671, 0
    %v688 = vadd.f32 %v650, %v687
    %v690 = vsel %vm337, %v631, 0
    %v693 = vsel %vm337, %v646, 0
    %695 = vmatpush.xpose.msra.mxu0 0.0
    %696 = vmatpush.xpose.msra.mxu0 0.0
    %697 = vmatpush.xpose.msra.mxu0 0.0
    %698 = vmatpush.xpose.msra.mxu0 0.0
    %699 = vmatpush.xpose.msra.mxu0 0.0
    %700 = vmatpush.xpose.msra.mxu0 0.0
    %701 = vmatpush.xpose.msra.mxu0 0.0
    %702 = vmatpush.xpose.msra.mxu0 0.0
    %703 = vmatpush.xpose.msra.mxu0 0.0
    %704 = vmatpush.xpose.msra.mxu0 0.0
    %705 = vmatpush.xpose.msra.mxu0 0.0
    %706 = vmatpush.xpose.msra.mxu0 0.0
    %707 = vmatpush.xpose.msra.mxu0 0.0
    %708 = vmatpush.xpose.msra.mxu0 0.0
    %709 = vmatpush.xpose.msra.mxu0 0.0
    %710 = vmatpush.xpose.msra.mxu0 %v693
    %711 = vmatmul.f32.gmra.mxu0 %v690
    %v712 = vpop.f32.mrf.mxu0
    %v713 = vadd.f32 0.0, %v712
    %714 = vdwg.mxu0
    %v715 = vmul.f32 %v713, 2.0
    %v716 = vsub.f32 %v688, %v715
    %v717 = vmax.f32 %v716, 0.0
    %v718 = vrsqrt.pop %v717
    %v719 = vmul.f32 %v718, %v717
    %v720 = vmul.f32 %v719, %v718
    %v721 = vmul.f32 0.5, %v720
    %v722 = vsub.f32 1.5, %v721
    %v723 = vmul.f32 %v718, %v722
    %v724 = vmul.f32 %v717, %v723
    %vm725 = vcmp.eq.f32.partialorder %v717, inf
    %v726 = vsel %vm725, %v717, %v724
    %vm727 = vcmp.eq.f32.partialorder %v717, 0.0
    %v728 = vand.u32 %v717, 2147483648
    %v729 = vsel %vm727, %v728, %v726
    %v730 = vsel %vm517, %v729, -inf
    %731 = vmax.xlane.f32.xlu0 %v730
    %v732 = vpop.xlane.xlu0 %731
    %v733 = vrot.slane %v732, 4
    %v734 = vmax.f32 %v732, %v733
    %v735 = vrot.slane %v734, 2
    %v736 = vmax.f32 %v734, %v735
    %v737 = vrot.slane %v736, 1
    %v738 = vmax.f32 %v736, %v737
    %s739 = vtos %v738
    %v740 = vstv %s739
    %v741 = vrcp.pop %v740
    %v742 = vmul.f32 %v729, %v741
    %v743 = vsub.f32 1.0, %v742
    %744 = vst.msk [vmem:[#allocation32] sm:$0xff] %vm517, %v743
    %745 = vst.msk [vmem:[#allocation2] sm:$0xff] %vm337, %v432
    %746 = vst.msk [vmem:[#allocation2 + $0x8] sm:$0xff] %vm337, %v631
    %747 = vst.msk [vmem:[#allocation2 + $0x10] sm:$0xff] %vm337, %v433
    %748 = vst.msk [vmem:[#allocation2 + $0x18] sm:$0xff] %vm337, %v646
    %v749 = vld [vmem:[%s2] sm:$0xff]
    %v750 = vld [vmem:[%s2 + $0x8] sm:$0xff]
    %v751 = vand.u32 2147483647, %v749
    %v752 = vand.u32 2147483647, %v750
    %v753 = vsel %vm337, %v751, 0.0
    %v754 = vsel %vm337, %v752, 0.0
    %v755 = vadd.f32 %v753, %v754
    %v756 = vrot.slane %v755, 4
    %v757 = vadd.f32 %v755, %v756
    %v758 = vrot.slane %v757, 2
    %v759 = vadd.f32 %v757, %v758
    %v760 = vrot.slane %v759, 1
    %v761 = vadd.f32 %v759, %v760
    %v762 = vmax.f32 %v761, 1e-12
    %v763 = vrcp.pop %v762
    %v764 = vmul.f32 %v749, %v763
    %v765 = vmul.f32 %v750, %v763
    %v766 = vld [vmem:[#allocation3] sm:$0xff]
    %v767 = vld [vmem:[#allocation3 + $0x8] sm:$0xff]
    %v768 = vand.u32 2147483647, %v766
    %v769 = vand.u32 2147483647, %v767
    %v770 = vsel %vm337, %v768, 0.0
    %v771 = vsel %vm337, %v769, 0.0
    %v772 = vadd.f32 %v770, %v771
    %v773 = vrot.slane %v772, 4
    %v774 = vadd.f32 %v772, %v773
    %v775 = vrot.slane %v774, 2
    %v776 = vadd.f32 %v774, %v775
    %v777 = vrot.slane %v776, 1
    %v778 = vadd.f32 %v776, %v777
    %v779 = vmax.f32 %v778, 1e-12
    %v780 = vrcp.pop %v779
    %v781 = vmul.f32 %v766, %v780
    %v782 = vmul.f32 %v767, %v780
    %v783 = vlaneseq
    %v784 = vshrl.u32 %v783, 7
    %v785 = vadd.s32 %v784, 8
    %v786 = vlaneseq
    %v787 = vand.u32 %v786, 127
    %vm788 = vcmp.lt.s32.totalorder %v784, 8
    %vm789 = vcmp.lt.s32.totalorder %v785, 8
    %vm790 = vcmp.lt.s32.totalorder %v787, 8
    %vm791 = vmand %vm788, %vm790
    %vm792 = vmand %vm789, %vm790
    %vm793 = vcmp.ge.s32.totalorder %v784, 8
    %vm794 = vcmp.ge.s32.totalorder %v785, 8
    %vm795 = vcmp.ge.s32.totalorder %v787, 8
    %vm796 = vmand %vm793, %vm795
    %vm797 = vmand %vm794, %vm795
    %vm798 = vmor %vm791, %vm796
    %vm799 = vmor %vm792, %vm797
    %v800 = vsel %vm798, 1.0, 0.0
    %v801 = vsel %vm799, 1.0, 0.0
    %v802 = vld [vmem:[#allocation2] sm:$0xff]
    %v803 = vld [vmem:[#allocation2 + $0x8] sm:$0xff]
    %v804 = vld [vmem:[#allocation2 + $0x10] sm:$0xff]
    %v805 = vld [vmem:[#allocation2 + $0x18] sm:$0xff]
    %v806 = vld [vmem:[#allocation17] sm:$0xff]
    %v807 = vld [vmem:[#allocation17 + $0x8] sm:$0xff]
    %v808 = vld [vmem:[#allocation18] sm:$0x1]
    %v810 = vperm.slane %v808, 0
    %v813 = vsel %vm337, %v802, 0
    %v816 = vsel %vm337, %v803, 0
    %v819 = vsel %vm337, %v804, 0
    %v822 = vsel %vm337, %v805, 0
    %824 = vmatpush.msra.mxu0 0.0
    %825 = vmatpush.msra.mxu0 0.0
    %826 = vmatpush.msra.mxu0 0.0
    %827 = vmatpush.msra.mxu0 0.0
    %828 = vmatpush.msra.mxu0 0.0
    %829 = vmatpush.msra.mxu0 0.0
    %830 = vmatpush.msra.mxu0 0.0
    %831 = vmatpush.msra.mxu0 0.0
    %832 = vmatpush.msra.mxu0 0.0
    %833 = vmatpush.msra.mxu0 0.0
    %834 = vmatpush.msra.mxu0 0.0
    %835 = vmatpush.msra.mxu0 0.0
    %836 = vmatpush.msra.mxu0 0.0
    %837 = vmatpush.msra.mxu0 0.0
    %838 = vmatpush.msra.mxu0 %v807
    %839 = vmatpush.msra.mxu0 %v806
    %840 = vmatmul.f32.gmra.mxu0 %v813
    %v841 = vpop.f32.mrf.mxu0
    %v842 = vadd.f32 %v810, %v841
    %843 = vmatmul.f32.gmra.mxu0 %v816
    %v844 = vpop.f32.mrf.mxu0
    %v845 = vadd.f32 %v810, %v844
    %846 = vmatmul.f32.gmra.mxu0 %v819
    %v847 = vpop.f32.mrf.mxu0
    %v848 = vadd.f32 %v810, %v847
    %849 = vmatmul.f32.gmra.mxu0 %v822
    %v850 = vpop.f32.mrf.mxu0
    %v851 = vadd.f32 %v810, %v850
    %852 = vdwg.mxu0
    %v853 = vmax.f32 %v842, 0.0
    %v854 = vmax.f32 %v845, 0.0
    %v855 = vmax.f32 %v848, 0.0
    %v856 = vmax.f32 %v851, 0.0
    %v857 = vld [vmem:[#allocation20] sm:$0xff]
    %v858 = vld [vmem:[#allocation20 + $0x8] sm:$0xff]
    %v859 = vld [vmem:[%s15] sm:$0x1]
    %v861 = vperm.slane %v859, 0
    %863 = vmatpush.msra.mxu0 0.0
    %864 = vmatpush.msra.mxu0 0.0
    %865 = vmatpush.msra.mxu0 0.0
    %866 = vmatpush.msra.mxu0 0.0
    %867 = vmatpush.msra.mxu0 0.0
    %868 = vmatpush.msra.mxu0 0.0
    %869 = vmatpush.msra.mxu0 0.0
    %870 = vmatpush.msra.mxu0 0.0
    %871 = vmatpush.msra.mxu0 0.0
    %872 = vmatpush.msra.mxu0 0.0
    %873 = vmatpush.msra.mxu0 0.0
    %874 = vmatpush.msra.mxu0 0.0
    %875 = vmatpush.msra.mxu0 0.0
    %876 = vmatpush.msra.mxu0 0.0
    %877 = vmatpush.msra.mxu0 %v858
    %878 = vmatpush.msra.mxu0 %v857
    %879 = vmatmul.f32.gmra.mxu0 %v813
    %v880 = vpop.f32.mrf.mxu0
    %v881 = vadd.f32 %v861, %v880
    %882 = vmatmul.f32.gmra.mxu0 %v816
    %v883 = vpop.f32.mrf.mxu0
    %v884 = vadd.f32 %v861, %v883
    %885 = vmatmul.f32.gmra.mxu0 %v819
    %v886 = vpop.f32.mrf.mxu0
    %v887 = vadd.f32 %v861, %v886
    %888 = vmatmul.f32.gmra.mxu0 %v822
    %v889 = vpop.f32.mrf.mxu0
    %v890 = vadd.f32 %v861, %v889
    %891 = vdwg.mxu0
    %v892 = vmax.f32 %v881, 0.0
    %v893 = vmax.f32 %v884, 0.0
    %v894 = vmax.f32 %v887, 0.0
    %v895 = vmax.f32 %v890, 0.0
    %v897 = vsel %vm337, %v764, 0
    %v900 = vsel %vm337, %v765, 0
    %902 = vmatpush.msra.mxu0 0.0
    %903 = vmatpush.msra.mxu0 0.0
    %904 = vmatpush.msra.mxu0 0.0
    %905 = vmatpush.msra.mxu0 0.0
    %906 = vmatpush.msra.mxu0 0.0
    %907 = vmatpush.msra.mxu0 0.0
    %908 = vmatpush.msra.mxu0 0.0
    %909 = vmatpush.msra.mxu0 0.0
    %910 = vmatpush.msra.mxu0 0.0
    %911 = vmatpush.msra.mxu0 0.0
    %912 = vmatpush.msra.mxu0 0.0
    %913 = vmatpush.msra.mxu0 0.0
    %914 = vmatpush.msra.mxu0 0.0
    %915 = vmatpush.msra.mxu0 0.0
    %916 = vmatpush.msra.mxu0 %v854
    %917 = vmatpush.msra.mxu0 %v853
    %918 = vmatmul.f32.gmra.mxu0 %v897
    %v919 = vpop.f32.mrf.mxu0
    %v920 = vadd.f32 %v892, %v919
    %921 = vmatmul.f32.gmra.mxu0 %v900
    %v922 = vpop.f32.mrf.mxu0
    %v923 = vadd.f32 %v893, %v922
    %924 = vdwg.mxu0
    %v925 = vmul.f32 %v920, %v920
    %v926 = vmul.f32 %v923, %v923
    %v927 = vsel %vm337, %v925, 0.0
    %928 = vadd.xlane.f32.xlu0 %v927
    %v929 = vpop.xlane.xlu0 %928
    %v930 = vsel %vm337, %v926, 0.0
    %931 = vadd.xlane.f32.xlu0 %v930
    %v932 = vpop.xlane.xlu0 %931
    %v933 = vmax.f32 %v929, 1e-24
    %v934 = vmax.f32 %v932, 1e-24
    %v935 = vrsqrt.pop %v933
    %v936 = vmul.f32 %v935, %v933
    %v937 = vmul.f32 %v936, %v935
    %v938 = vmul.f32 0.5, %v937
    %v939 = vsub.f32 1.5, %v938
    %v940 = vmul.f32 %v935, %v939
    %vm941 = vweird.f32 %v933
    %vm942 = vweird.f32 %v935
    %vm943 = vmor %vm941, %vm942
    %v944 = vsel %vm943, %v935, %v940
    %v945 = vrsqrt.pop %v934
    %v946 = vmul.f32 %v945, %v934
    %v947 = vmul.f32 %v946, %v945
    %v948 = vmul.f32 0.5, %v947
    %v949 = vsub.f32 1.5, %v948
    %v950 = vmul.f32 %v945, %v949
    %vm951 = vweird.f32 %v934
    %vm952 = vweird.f32 %v945
    %vm953 = vmor %vm951, %vm952
    %v954 = vsel %vm953, %v945, %v950
    %v955 = vmul.f32 %v920, %v944
    %v956 = vmul.f32 %v923, %v954
    %v958 = vsel %vm337, %v781, 0
    %v961 = vsel %vm337, %v782, 0
    %963 = vmatpush.msra.mxu0 0.0
    %964 = vmatpush.msra.mxu0 0.0
    %965 = vmatpush.msra.mxu0 0.0
    %966 = vmatpush.msra.mxu0 0.0
    %967 = vmatpush.msra.mxu0 0.0
    %968 = vmatpush.msra.mxu0 0.0
    %969 = vmatpush.msra.mxu0 0.0
    %970 = vmatpush.msra.mxu0 0.0
    %971 = vmatpush.msra.mxu0 0.0
    %972 = vmatpush.msra.mxu0 0.0
    %973 = vmatpush.msra.mxu0 0.0
    %974 = vmatpush.msra.mxu0 0.0
    %975 = vmatpush.msra.mxu0 0.0
    %976 = vmatpush.msra.mxu0 0.0
    %977 = vmatpush.msra.mxu0 %v856
    %978 = vmatpush.msra.mxu0 %v855
    %979 = vmatmul.f32.gmra.mxu0 %v958
    %v980 = vpop.f32.mrf.mxu0
    %v981 = vadd.f32 %v894, %v980
    %982 = vmatmul.f32.gmra.mxu0 %v961
    %v983 = vpop.f32.mrf.mxu0
    %v984 = vadd.f32 %v895, %v983
    %985 = vdwg.mxu0
    %v986 = vmul.f32 %v981, %v981
    %v987 = vmul.f32 %v984, %v984
    %v988 = vsel %vm337, %v986, 0.0
    %989 = vadd.xlane.f32.xlu0 %v988
    %v990 = vpop.xlane.xlu0 %989
    %v991 = vsel %vm337, %v987, 0.0
    %992 = vadd.xlane.f32.xlu0 %v991
    %v993 = vpop.xlane.xlu0 %992
    %v994 = vmax.f32 %v990, 1e-24
    %v995 = vmax.f32 %v993, 1e-24
    %v996 = vrsqrt.pop %v994
    %v997 = vmul.f32 %v996, %v994
    %v998 = vmul.f32 %v997, %v996
    %v999 = vmul.f32 0.5, %v998
    %v1000 = vsub.f32 1.5, %v999
    %v1001 = vmul.f32 %v996, %v1000
    %vm1002 = vweird.f32 %v994
    %vm1003 = vweird.f32 %v996
    %vm1004 = vmor %vm1002, %vm1003
    %v1005 = vsel %vm1004, %v996, %v1001
    %v1006 = vrsqrt.pop %v995
    %v1007 = vmul.f32 %v1006, %v995
    %v1008 = vmul.f32 %v1007, %v1006
    %v1009 = vmul.f32 0.5, %v1008
    %v1010 = vsub.f32 1.5, %v1009
    %v1011 = vmul.f32 %v1006, %v1010
    %vm1012 = vweird.f32 %v995
    %vm1013 = vweird.f32 %v1006
    %vm1014 = vmor %vm1012, %vm1013
    %v1015 = vsel %vm1014, %v1006, %v1011
    %v1016 = vmul.f32 %v981, %v1005
    %v1017 = vmul.f32 %v984, %v1015
    %v1018 = vld [vmem:[#allocation21] sm:$0xff]
    %v1019 = vld [vmem:[#allocation21 + $0x8] sm:$0xff]
    %v1021 = vsel %vm337, %v955, 0
    %v1024 = vsel %vm337, %v956, 0
    %1026 = vmatpush.msra.mxu0 0.0
    %1027 = vmatpush.msra.mxu0 0.0
    %1028 = vmatpush.msra.mxu0 0.0
    %1029 = vmatpush.msra.mxu0 0.0
    %1030 = vmatpush.msra.mxu0 0.0
    %1031 = vmatpush.msra.mxu0 0.0
    %1032 = vmatpush.msra.mxu0 0.0
    %1033 = vmatpush.msra.mxu0 0.0
    %1034 = vmatpush.msra.mxu0 0.0
    %1035 = vmatpush.msra.mxu0 0.0
    %1036 = vmatpush.msra.mxu0 0.0
    %1037 = vmatpush.msra.mxu0 0.0
    %1038 = vmatpush.msra.mxu0 0.0
    %1039 = vmatpush.msra.mxu0 0.0
    %1040 = vmatpush.msra.mxu0 %v1019
    %1041 = vmatpush.msra.mxu0 %v1018
    %1042 = vmatmul.f32.gmra.mxu0 %v1021
    %v1043 = vpop.f32.mrf.mxu0
    %v1044 = vadd.f32 0.0, %v1043
    %1045 = vmatmul.f32.gmra.mxu0 %v1024
    %v1046 = vpop.f32.mrf.mxu0
    %v1047 = vadd.f32 0.0, %v1046
    %1048 = vdwg.mxu0
    %v1050 = vsel %vm337, %v1044, 0
    %v1053 = vsel %vm337, %v1047, 0
    %v1056 = vsel %vm337, %v1016, 0
    %v1059 = vsel %vm337, %v1017, 0
    %1061 = vmatpush.xpose.msra.mxu0 0.0
    %1062 = vmatpush.xpose.msra.mxu0 0.0
    %1063 = vmatpush.xpose.msra.mxu0 0.0
    %1064 = vmatpush.xpose.msra.mxu0 0.0
    %1065 = vmatpush.xpose.msra.mxu0 0.0
    %1066 = vmatpush.xpose.msra.mxu0 0.0
    %1067 = vmatpush.xpose.msra.mxu0 0.0
    %1068 = vmatpush.xpose.msra.mxu0 0.0
    %1069 = vmatpush.xpose.msra.mxu0 0.0
    %1070 = vmatpush.xpose.msra.mxu0 0.0
    %1071 = vmatpush.xpose.msra.mxu0 0.0
    %1072 = vmatpush.xpose.msra.mxu0 0.0
    %1073 = vmatpush.xpose.msra.mxu0 0.0
    %1074 = vmatpush.xpose.msra.mxu0 0.0
    %1075 = vmatpush.xpose.msra.mxu0 %v1059
    %1076 = vmatpush.xpose.msra.mxu0 %v1056
    %1077 = vmatmul.f32.gmra.mxu0 %v1050
    %v1078 = vpop.f32.mrf.mxu0
    %v1079 = vadd.f32 0.0, %v1078
    %1080 = vmatmul.f32.gmra.mxu0 %v1053
    %v1081 = vpop.f32.mrf.mxu0
    %v1082 = vadd.f32 0.0, %v1081
    %1083 = vdwg.mxu0
    %v1084 = vmul.f32 %v1079, %v800
    %v1085 = vmul.f32 %v1082, %v801
    %v1086 = vmul.f32 %v1084, 200.0
    %v1087 = vmul.f32 %v1085, 200.0
    %v1088 = vsel %vm337, %v1086, -inf
    %1089 = vmax.xlane.f32.xlu0 %v1088
    %v1090 = vpop.xlane.xlu0 %1089
    %v1091 = vsel %vm337, %v1087, -inf
    %1092 = vmax.xlane.f32.xlu0 %v1091
    %v1093 = vpop.xlane.xlu0 %1092
    %v1094 = vsub.f32 %v1086, %v1090
    %v1095 = vsub.f32 %v1087, %v1093
    %v1096 = vmul.f32 %v1094, 1.442695
    %v1097 = vpow.pop %v1096
    %v1098 = vmul.f32 %v1095, 1.442695
    %v1099 = vpow.pop %v1098
    %v1100 = vsel %vm337, %v1097, 0.0
    %1101 = vadd.xlane.f32.xlu0 %v1100
    %v1102 = vpop.xlane.xlu0 %1101
    %v1103 = vsel %vm337, %v1099, 0.0
    %1104 = vadd.xlane.f32.xlu0 %v1103
    %v1105 = vpop.xlane.xlu0 %1104
    %v1106 = vrcp.pop %v1102
    %v1107 = vrcp.pop %v1105
    %v1108 = vmul.f32 %v1097, %v1106
    %v1109 = vmul.f32 %v1099, %v1107
    %v1110 = vadd.f32 %v1108, 0.0001
    %v1111 = vadd.f32 %v1109, 0.0001
    %v1112 = vmul.f32 %v1110, %v800
    %v1113 = vmul.f32 %v1111, %v801
    %v1114 = vsel %vm337, %v1112, 0.0
    %v1115 = vsel %vm337, %v1113, 0.0
    %v1116 = vadd.f32 %v1114, %v1115
    %v1117 = vrot.slane %v1116, 4
    %v1118 = vadd.f32 %v1116, %v1117
    %v1119 = vrot.slane %v1118, 2
    %v1120 = vadd.f32 %v1118, %v1119
    %v1121 = vrot.slane %v1120, 1
    %v1122 = vadd.f32 %v1120, %v1121
    %v1123 = vrcp.pop %v1122
    %v1124 = vmul.f32 %v1112, %v1123
    %v1125 = vmul.f32 %v1113, %v1123
    %v1126 = vsel %vm337, %v1124, 0.0
    %1127 = vadd.xlane.f32.xlu0 %v1126
    %v1128 = vpop.xlane.xlu0 %1127
    %v1129 = vsel %vm337, %v1125, 0.0
    %1130 = vadd.xlane.f32.xlu0 %v1129
    %v1131 = vpop.xlane.xlu0 %1130
    %v1132 = vrcp.pop %v1128
    %v1133 = vrcp.pop %v1131
    %v1134 = vmul.f32 %v1124, %v1132
    %v1135 = vmul.f32 %v1125, %v1133
    %v1136 = vsel %vm337, %v1134, 0.0
    %v1137 = vsel %vm337, %v1135, 0.0
    %v1138 = vadd.f32 %v1136, %v1137
    %v1139 = vrot.slane %v1138, 4
    %v1140 = vadd.f32 %v1138, %v1139
    %v1141 = vrot.slane %v1140, 2
    %v1142 = vadd.f32 %v1140, %v1141
    %v1143 = vrot.slane %v1142, 1
    %v1144 = vadd.f32 %v1142, %v1143
    %v1145 = vrcp.pop %v1144
    %v1146 = vmul.f32 %v1134, %v1145
    %v1147 = vmul.f32 %v1135, %v1145
    %v1148 = vsel %vm337, %v1146, 0.0
    %1149 = vadd.xlane.f32.xlu0 %v1148
    %v1150 = vpop.xlane.xlu0 %1149
    %v1151 = vsel %vm337, %v1147, 0.0
    %1152 = vadd.xlane.f32.xlu0 %v1151
    %v1153 = vpop.xlane.xlu0 %1152
    %v1154 = vrcp.pop %v1150
    %v1155 = vrcp.pop %v1153
    %v1156 = vmul.f32 %v1146, %v1154
    %v1157 = vmul.f32 %v1147, %v1155
    %v1158 = vsel %vm337, %v1156, 0.0
    %v1159 = vsel %vm337, %v1157, 0.0
    %v1160 = vadd.f32 %v1158, %v1159
    %v1161 = vrot.slane %v1160, 4
    %v1162 = vadd.f32 %v1160, %v1161
    %v1163 = vrot.slane %v1162, 2
    %v1164 = vadd.f32 %v1162, %v1163
    %v1165 = vrot.slane %v1164, 1
    %v1166 = vadd.f32 %v1164, %v1165
    %v1167 = vrcp.pop %v1166
    %v1168 = vmul.f32 %v1156, %v1167
    %v1169 = vmul.f32 %v1157, %v1167
    %v1170 = vsel %vm337, %v1168, 0.0
    %1171 = vadd.xlane.f32.xlu0 %v1170
    %v1172 = vpop.xlane.xlu0 %1171
    %v1173 = vsel %vm337, %v1169, 0.0
    %1174 = vadd.xlane.f32.xlu0 %v1173
    %v1175 = vpop.xlane.xlu0 %1174
    %v1176 = vrcp.pop %v1172
    %v1177 = vrcp.pop %v1175
    %v1178 = vmul.f32 %v1168, %v1176
    %v1179 = vmul.f32 %v1169, %v1177
    %v1180 = vsel %vm337, %v1178, 0.0
    %v1181 = vsel %vm337, %v1179, 0.0
    %v1182 = vadd.f32 %v1180, %v1181
    %v1183 = vrot.slane %v1182, 4
    %v1184 = vadd.f32 %v1182, %v1183
    %v1185 = vrot.slane %v1184, 2
    %v1186 = vadd.f32 %v1184, %v1185
    %v1187 = vrot.slane %v1186, 1
    %v1188 = vadd.f32 %v1186, %v1187
    %v1189 = vrcp.pop %v1188
    %v1190 = vmul.f32 %v1178, %v1189
    %v1191 = vmul.f32 %v1179, %v1189
    %v1192 = vsel %vm337, %v1190, 0.0
    %1193 = vadd.xlane.f32.xlu0 %v1192
    %v1194 = vpop.xlane.xlu0 %1193
    %v1195 = vsel %vm337, %v1191, 0.0
    %1196 = vadd.xlane.f32.xlu0 %v1195
    %v1197 = vpop.xlane.xlu0 %1196
    %v1198 = vrcp.pop %v1194
    %v1199 = vrcp.pop %v1197
    %v1200 = vmul.f32 %v1190, %v1198
    %v1201 = vmul.f32 %v1191, %v1199
    %v1202 = vsel %vm337, %v1200, 0.0
    %v1203 = vsel %vm337, %v1201, 0.0
    %v1204 = vadd.f32 %v1202, %v1203
    %v1205 = vrot.slane %v1204, 4
    %v1206 = vadd.f32 %v1204, %v1205
    %v1207 = vrot.slane %v1206, 2
    %v1208 = vadd.f32 %v1206, %v1207
    %v1209 = vrot.slane %v1208, 1
    %v1210 = vadd.f32 %v1208, %v1209
    %v1211 = vrcp.pop %v1210
    %v1212 = vmul.f32 %v1200, %v1211
    %v1213 = vmul.f32 %v1201, %v1211
    %v1214 = vsel %vm337, %v1212, 0.0
    %1215 = vadd.xlane.f32.xlu0 %v1214
    %v1216 = vpop.xlane.xlu0 %1215
    %v1217 = vsel %vm337, %v1213, 0.0
    %1218 = vadd.xlane.f32.xlu0 %v1217
    %v1219 = vpop.xlane.xlu0 %1218
    %v1220 = vrcp.pop %v1216
    %v1221 = vrcp.pop %v1219
    %v1222 = vmul.f32 %v1212, %v1220
    %v1223 = vmul.f32 %v1213, %v1221
    %v1225 = vsel %vm337, %v1222, 0
    %v1228 = vsel %vm337, %v1223, 0
    %1230 = vmatpush.msra.mxu0 0.0
    %1231 = vmatpush.msra.mxu0 0.0
    %1232 = vmatpush.msra.mxu0 0.0
    %1233 = vmatpush.msra.mxu0 0.0
    %1234 = vmatpush.msra.mxu0 0.0
    %1235 = vmatpush.msra.mxu0 0.0
    %1236 = vmatpush.msra.mxu0 0.0
    %1237 = vmatpush.msra.mxu0 0.0
    %1238 = vmatpush.msra.mxu0 0.0
    %1239 = vmatpush.msra.mxu0 0.0
    %1240 = vmatpush.msra.mxu0 0.0
    %1241 = vmatpush.msra.mxu0 0.0
    %1242 = vmatpush.msra.mxu0 0.0
    %1243 = vmatpush.msra.mxu0 0.0
    %1244 = vmatpush.msra.mxu0 %v1017
    %1245 = vmatpush.msra.mxu0 %v1016
    %1246 = vmatmul.f32.gmra.mxu0 %v1225
    %v1247 = vpop.f32.mrf.mxu0
    %v1248 = vadd.f32 0.0, %v1247
    %1249 = vmatmul.f32.gmra.mxu0 %v1228
    %v1250 = vpop.f32.mrf.mxu0
    %v1251 = vadd.f32 0.0, %v1250
    %1252 = vdwg.mxu0
    %1253 = vxpose.xlu0.b32.start [1/16] %v1222, 128
    %1254 = vxpose.xlu0.b32.cont [2/16] %v1223, 128
    %1255 = vxpose.xlu0.b32.cont [3/16] 0.0, 128
    %1256 = vxpose.xlu0.b32.cont [4/16] 0.0, 128
    %1257 = vxpose.xlu0.b32.cont [5/16] 0.0, 128
    %1258 = vxpose.xlu0.b32.cont [6/16] 0.0, 128
    %1259 = vxpose.xlu0.b32.cont [7/16] 0.0, 128
    %1260 = vxpose.xlu0.b32.cont [8/16] 0.0, 128
    %1261 = vxpose.xlu0.b32.cont [9/16] 0.0, 128
    %1262 = vxpose.xlu0.b32.cont [10/16] 0.0, 128
    %1263 = vxpose.xlu0.b32.cont [11/16] 0.0, 128
    %1264 = vxpose.xlu0.b32.cont [12/16] 0.0, 128
    %1265 = vxpose.xlu0.b32.cont [13/16] 0.0, 128
    %1266 = vxpose.xlu0.b32.cont [14/16] 0.0, 128
    %1267 = vxpose.xlu0.b32.cont [15/16] 0.0, 128
    %1268 = vxpose.xlu0.b32.end [16/16] 0.0, 128
    %v1269 = vpop.trf.xlu0
    %v1270 = vpop.trf.xlu0
    %v1271 = vpop.trf.xlu0
    %v1272 = vpop.trf.xlu0
    %v1273 = vpop.trf.xlu0
    %v1274 = vpop.trf.xlu0
    %v1275 = vpop.trf.xlu0
    %v1276 = vpop.trf.xlu0
    %v1277 = vpop.trf.xlu0
    %v1278 = vpop.trf.xlu0
    %v1279 = vpop.trf.xlu0
    %v1280 = vpop.trf.xlu0
    %v1281 = vpop.trf.xlu0
    %v1282 = vpop.trf.xlu0
    %v1283 = vpop.trf.xlu0
    %v1284 = vpop.trf.xlu0
    %v1286 = vsel %vm337, %v1269, 0
    %v1289 = vsel %vm337, %v1270, 0
    %1291 = vmatpush.msra.mxu0 0.0
    %1292 = vmatpush.msra.mxu0 0.0
    %1293 = vmatpush.msra.mxu0 0.0
    %1294 = vmatpush.msra.mxu0 0.0
    %1295 = vmatpush.msra.mxu0 0.0
    %1296 = vmatpush.msra.mxu0 0.0
    %1297 = vmatpush.msra.mxu0 0.0
    %1298 = vmatpush.msra.mxu0 0.0
    %1299 = vmatpush.msra.mxu0 0.0
    %1300 = vmatpush.msra.mxu0 0.0
    %1301 = vmatpush.msra.mxu0 0.0
    %1302 = vmatpush.msra.mxu0 0.0
    %1303 = vmatpush.msra.mxu0 0.0
    %1304 = vmatpush.msra.mxu0 0.0
    %1305 = vmatpush.msra.mxu0 %v956
    %1306 = vmatpush.msra.mxu0 %v955
    %1307 = vmatmul.f32.gmra.mxu0 %v1286
    %v1308 = vpop.f32.mrf.mxu0
    %v1309 = vadd.f32 0.0, %v1308
    %1310 = vmatmul.f32.gmra.mxu0 %v1289
    %v1311 = vpop.f32.mrf.mxu0
    %v1312 = vadd.f32 0.0, %v1311
    %1313 = vdwg.mxu0
    %v1314 = vld [vmem:[#allocation27] sm:$0xff]
    %v1315 = vld [vmem:[#allocation27 + $0x8] sm:$0xff]
    %v1316 = vld [vmem:[%s23] sm:$0xff]
    %v1317 = vld [vmem:[%s23 + $0x8] sm:$0xff]
    %v1318 = vld [vmem:[%s24] sm:$0x1]
    %v1320 = vsel %vm337, %v1248, 0
    %v1323 = vsel %vm337, %v1251, 0
    %1325 = vmatpush.msra.mxu0 0.0
    %1326 = vmatpush.msra.mxu0 0.0
    %1327 = vmatpush.msra.mxu0 0.0
    %1328 = vmatpush.msra.mxu0 0.0
    %1329 = vmatpush.msra.mxu0 0.0
    %1330 = vmatpush.msra.mxu0 0.0
    %1331 = vmatpush.msra.mxu0 0.0
    %1332 = vmatpush.msra.mxu0 0.0
    %1333 = vmatpush.msra.mxu0 0.0
    %1334 = vmatpush.msra.mxu0 0.0
    %1335 = vmatpush.msra.mxu0 0.0
    %1336 = vmatpush.msra.mxu0 0.0
    %1337 = vmatpush.msra.mxu0 0.0
    %1338 = vmatpush.msra.mxu0 0.0
    %1339 = vmatpush.msra.mxu0 %v1317
    %1340 = vmatpush.msra.mxu0 %v1316
    %1341 = vmatmul.f32.gmra.mxu0 %v1320
    %v1342 = vpop.f32.mrf.mxu0
    %v1343 = vadd.f32 0.0, %v1342
    %1344 = vmatmul.f32.gmra.mxu0 %v1323
    %v1345 = vpop.f32.mrf.mxu0
    %v1346 = vadd.f32 0.0, %v1345
    %1347 = vdwg.mxu0
    %1348 = vmatpush.msra.mxu0 0.0
    %1349 = vmatpush.msra.mxu0 0.0
    %1350 = vmatpush.msra.mxu0 0.0
    %1351 = vmatpush.msra.mxu0 0.0
    %1352 = vmatpush.msra.mxu0 0.0
    %1353 = vmatpush.msra.mxu0 0.0
    %1354 = vmatpush.msra.mxu0 0.0
    %1355 = vmatpush.msra.mxu0 0.0
    %1356 = vmatpush.msra.mxu0 0.0
    %1357 = vmatpush.msra.mxu0 0.0
    %1358 = vmatpush.msra.mxu0 0.0
    %1359 = vmatpush.msra.mxu0 0.0
    %1360 = vmatpush.msra.mxu0 0.0
    %1361 = vmatpush.msra.mxu0 0.0
    %1362 = vmatpush.msra.mxu0 %v1315
    %1363 = vmatpush.msra.mxu0 %v1314
    %1364 = vmatmul.f32.gmra.mxu0 %v1021
    %v1365 = vpop.f32.mrf.mxu0
    %v1366 = vadd.f32 %v1343, %v1365
    %1367 = vmatmul.f32.gmra.mxu0 %v1024
    %v1368 = vpop.f32.mrf.mxu0
    %v1369 = vadd.f32 %v1346, %v1368
    %1370 = vdwg.mxu0
    %v1372 = vperm.slane %v1318, 0
    %v1374 = vadd.f32 %v1366, %v1372
    %v1375 = vadd.f32 %v1369, %v1372
    %1376 = vst.msk [vmem:[#allocation2] sm:$0xff] %vm337, %v1374
    %1377 = vst.msk [vmem:[#allocation2 + $0x8] sm:$0xff] %vm337, %v1375
    %v1378 = vld [vmem:[#allocation27] sm:$0xff]
    %v1379 = vld [vmem:[#allocation27 + $0x8] sm:$0xff]
    %v1380 = vld [vmem:[%s23] sm:$0xff]
    %v1381 = vld [vmem:[%s23 + $0x8] sm:$0xff]
    %v1382 = vld [vmem:[%s24] sm:$0x1]
    %v1384 = vsel %vm337, %v1309, 0
    %v1387 = vsel %vm337, %v1312, 0
    %1389 = vmatpush.msra.mxu0 0.0
    %1390 = vmatpush.msra.mxu0 0.0
    %1391 = vmatpush.msra.mxu0 0.0
    %1392 = vmatpush.msra.mxu0 0.0
    %1393 = vmatpush.msra.mxu0 0.0
    %1394 = vmatpush.msra.mxu0 0.0
    %1395 = vmatpush.msra.mxu0 0.0
    %1396 = vmatpush.msra.mxu0 0.0
    %1397 = vmatpush.msra.mxu0 0.0
    %1398 = vmatpush.msra.mxu0 0.0
    %1399 = vmatpush.msra.mxu0 0.0
    %1400 = vmatpush.msra.mxu0 0.0
    %1401 = vmatpush.msra.mxu0 0.0
    %1402 = vmatpush.msra.mxu0 0.0
    %1403 = vmatpush.msra.mxu0 %v1381
    %1404 = vmatpush.msra.mxu0 %v1380
    %1405 = vmatmul.f32.gmra.mxu0 %v1384
    %v1406 = vpop.f32.mrf.mxu0
    %v1407 = vadd.f32 0.0, %v1406
    %1408 = vmatmul.f32.gmra.mxu0 %v1387
    %v1409 = vpop.f32.mrf.mxu0
    %v1410 = vadd.f32 0.0, %v1409
    %1411 = vdwg.mxu0
    %1412 = vmatpush.msra.mxu0 0.0
    %1413 = vmatpush.msra.mxu0 0.0
    %1414 = vmatpush.msra.mxu0 0.0
    %1415 = vmatpush.msra.mxu0 0.0
    %1416 = vmatpush.msra.mxu0 0.0
    %1417 = vmatpush.msra.mxu0 0.0
    %1418 = vmatpush.msra.mxu0 0.0
    %1419 = vmatpush.msra.mxu0 0.0
    %1420 = vmatpush.msra.mxu0 0.0
    %1421 = vmatpush.msra.mxu0 0.0
    %1422 = vmatpush.msra.mxu0 0.0
    %1423 = vmatpush.msra.mxu0 0.0
    %1424 = vmatpush.msra.mxu0 0.0
    %1425 = vmatpush.msra.mxu0 0.0
    %1426 = vmatpush.msra.mxu0 %v1379
    %1427 = vmatpush.msra.mxu0 %v1378
    %1428 = vmatmul.f32.gmra.mxu0 %v1056
    %v1429 = vpop.f32.mrf.mxu0
    %v1430 = vadd.f32 %v1407, %v1429
    %1431 = vmatmul.f32.gmra.mxu0 %v1059
    %v1432 = vpop.f32.mrf.mxu0
    %v1433 = vadd.f32 %v1410, %v1432
    %1434 = vdwg.mxu0
    %v1436 = vperm.slane %v1382, 0
    %v1438 = vadd.f32 %v1430, %v1436
    %v1439 = vadd.f32 %v1433, %v1436
    %1440 = vst.msk [vmem:[#allocation2 + $0x10] sm:$0xff] %vm337, %v1438
    %1441 = vst.msk [vmem:[#allocation2 + $0x18] sm:$0xff] %vm337, %v1439
    %v1442 = vld [vmem:[#allocation2] sm:$0xff]
    %v1443 = vld [vmem:[#allocation2 + $0x8] sm:$0xff]
    %v1444 = vld [vmem:[#allocation2 + $0x10] sm:$0xff]
    %v1445 = vld [vmem:[#allocation2 + $0x18] sm:$0xff]
    %v1446 = vld [vmem:[#allocation23] sm:$0xff]
    %v1447 = vld [vmem:[#allocation23 + $0x8] sm:$0xff]
    %v1448 = vld [vmem:[%s18] sm:$0x1]
    %v1450 = vperm.slane %v1448, 0
    %v1453 = vsel %vm337, %v1442, 0
    %v1456 = vsel %vm337, %v1443, 0
    %v1459 = vsel %vm337, %v1444, 0
    %v1462 = vsel %vm337, %v1445, 0
    %1464 = vmatpush.msra.mxu0 0.0
    %1465 = vmatpush.msra.mxu0 0.0
    %1466 = vmatpush.msra.mxu0 0.0
    %1467 = vmatpush.msra.mxu0 0.0
    %1468 = vmatpush.msra.mxu0 0.0
    %1469 = vmatpush.msra.mxu0 0.0
    %1470 = vmatpush.msra.mxu0 0.0
    %1471 = vmatpush.msra.mxu0 0.0
    %1472 = vmatpush.msra.mxu0 0.0
    %1473 = vmatpush.msra.mxu0 0.0
    %1474 = vmatpush.msra.mxu0 0.0
    %1475 = vmatpush.msra.mxu0 0.0
    %1476 = vmatpush.msra.mxu0 0.0
    %1477 = vmatpush.msra.mxu0 0.0
    %1478 = vmatpush.msra.mxu0 %v1447
    %1479 = vmatpush.msra.mxu0 %v1446
    %1480 = vmatmul.f32.gmra.mxu0 %v1453
    %v1481 = vpop.f32.mrf.mxu0
    %v1482 = vadd.f32 %v1450, %v1481
    %1483 = vmatmul.f32.gmra.mxu0 %v1456
    %v1484 = vpop.f32.mrf.mxu0
    %v1485 = vadd.f32 %v1450, %v1484
    %1486 = vmatmul.f32.gmra.mxu0 %v1459
    %v1487 = vpop.f32.mrf.mxu0
    %v1488 = vadd.f32 %v1450, %v1487
    %1489 = vmatmul.f32.gmra.mxu0 %v1462
    %v1490 = vpop.f32.mrf.mxu0
    %v1491 = vadd.f32 %v1450, %v1490
    %1492 = vdwg.mxu0
    %v1493 = vmax.f32 %v1482, 0.0
    %v1494 = vmax.f32 %v1485, 0.0
    %v1495 = vmax.f32 %v1488, 0.0
    %v1496 = vmax.f32 %v1491, 0.0
    %v1497 = vld [vmem:[#allocation24] sm:$0xff]
    %v1498 = vld [vmem:[#allocation24 + $0x8] sm:$0xff]
    %v1499 = vld [vmem:[%s20] sm:$0x1]
    %v1501 = vperm.slane %v1499, 0
    %1503 = vmatpush.msra.mxu0 0.0
    %1504 = vmatpush.msra.mxu0 0.0
    %1505 = vmatpush.msra.mxu0 0.0
    %1506 = vmatpush.msra.mxu0 0.0
    %1507 = vmatpush.msra.mxu0 0.0
    %1508 = vmatpush.msra.mxu0 0.0
    %1509 = vmatpush.msra.mxu0 0.0
    %1510 = vmatpush.msra.mxu0 0.0
    %1511 = vmatpush.msra.mxu0 0.0
    %1512 = vmatpush.msra.mxu0 0.0
    %1513 = vmatpush.msra.mxu0 0.0
    %1514 = vmatpush.msra.mxu0 0.0
    %1515 = vmatpush.msra.mxu0 0.0
    %1516 = vmatpush.msra.mxu0 0.0
    %1517 = vmatpush.msra.mxu0 %v1498
    %1518 = vmatpush.msra.mxu0 %v1497
    %1519 = vmatmul.f32.gmra.mxu0 %v1453
    %v1520 = vpop.f32.mrf.mxu0
    %v1521 = vadd.f32 %v1501, %v1520
    %1522 = vmatmul.f32.gmra.mxu0 %v1456
    %v1523 = vpop.f32.mrf.mxu0
    %v1524 = vadd.f32 %v1501, %v1523
    %1525 = vmatmul.f32.gmra.mxu0 %v1459
    %v1526 = vpop.f32.mrf.mxu0
    %v1527 = vadd.f32 %v1501, %v1526
    %1528 = vmatmul.f32.gmra.mxu0 %v1462
    %v1529 = vpop.f32.mrf.mxu0
    %v1530 = vadd.f32 %v1501, %v1529
    %1531 = vdwg.mxu0
    %v1532 = vmax.f32 %v1521, 0.0
    %v1533 = vmax.f32 %v1524, 0.0
    %v1534 = vmax.f32 %v1527, 0.0
    %v1535 = vmax.f32 %v1530, 0.0
    %1536 = vmatpush.msra.mxu0 0.0
    %1537 = vmatpush.msra.mxu0 0.0
    %1538 = vmatpush.msra.mxu0 0.0
    %1539 = vmatpush.msra.mxu0 0.0
    %1540 = vmatpush.msra.mxu0 0.0
    %1541 = vmatpush.msra.mxu0 0.0
    %1542 = vmatpush.msra.mxu0 0.0
    %1543 = vmatpush.msra.mxu0 0.0
    %1544 = vmatpush.msra.mxu0 0.0
    %1545 = vmatpush.msra.mxu0 0.0
    %1546 = vmatpush.msra.mxu0 0.0
    %1547 = vmatpush.msra.mxu0 0.0
    %1548 = vmatpush.msra.mxu0 0.0
    %1549 = vmatpush.msra.mxu0 0.0
    %1550 = vmatpush.msra.mxu0 %v1494
    %1551 = vmatpush.msra.mxu0 %v1493
    %1552 = vmatmul.f32.gmra.mxu0 %v897
    %v1553 = vpop.f32.mrf.mxu0
    %v1554 = vadd.f32 %v1532, %v1553
    %1555 = vmatmul.f32.gmra.mxu0 %v900
    %v1556 = vpop.f32.mrf.mxu0
    %v1557 = vadd.f32 %v1533, %v1556
    %1558 = vdwg.mxu0
    %v1559 = vmul.f32 %v1554, %v1554
    %v1560 = vmul.f32 %v1557, %v1557
    %v1561 = vsel %vm337, %v1559, 0.0
    %1562 = vadd.xlane.f32.xlu0 %v1561
    %v1563 = vpop.xlane.xlu0 %1562
    %v1564 = vsel %vm337, %v1560, 0.0
    %1565 = vadd.xlane.f32.xlu0 %v1564
    %v1566 = vpop.xlane.xlu0 %1565
    %v1567 = vmax.f32 %v1563, 1e-24
    %v1568 = vmax.f32 %v1566, 1e-24
    %v1569 = vrsqrt.pop %v1567
    %v1570 = vmul.f32 %v1569, %v1567
    %v1571 = vmul.f32 %v1570, %v1569
    %v1572 = vmul.f32 0.5, %v1571
    %v1573 = vsub.f32 1.5, %v1572
    %v1574 = vmul.f32 %v1569, %v1573
    %vm1575 = vweird.f32 %v1567
    %vm1576 = vweird.f32 %v1569
    %vm1577 = vmor %vm1575, %vm1576
    %v1578 = vsel %vm1577, %v1569, %v1574
    %v1579 = vrsqrt.pop %v1568
    %v1580 = vmul.f32 %v1579, %v1568
    %v1581 = vmul.f32 %v1580, %v1579
    %v1582 = vmul.f32 0.5, %v1581
    %v1583 = vsub.f32 1.5, %v1582
    %v1584 = vmul.f32 %v1579, %v1583
    %vm1585 = vweird.f32 %v1568
    %vm1586 = vweird.f32 %v1579
    %vm1587 = vmor %vm1585, %vm1586
    %v1588 = vsel %vm1587, %v1579, %v1584
    %v1589 = vmul.f32 %v1554, %v1578
    %v1590 = vmul.f32 %v1557, %v1588
    %1591 = vmatpush.msra.mxu0 0.0
    %1592 = vmatpush.msra.mxu0 0.0
    %1593 = vmatpush.msra.mxu0 0.0
    %1594 = vmatpush.msra.mxu0 0.0
    %1595 = vmatpush.msra.mxu0 0.0
    %1596 = vmatpush.msra.mxu0 0.0
    %1597 = vmatpush.msra.mxu0 0.0
    %1598 = vmatpush.msra.mxu0 0.0
    %1599 = vmatpush.msra.mxu0 0.0
    %1600 = vmatpush.msra.mxu0 0.0
    %1601 = vmatpush.msra.mxu0 0.0
    %1602 = vmatpush.msra.mxu0 0.0
    %1603 = vmatpush.msra.mxu0 0.0
    %1604 = vmatpush.msra.mxu0 0.0
    %1605 = vmatpush.msra.mxu0 %v1496
    %1606 = vmatpush.msra.mxu0 %v1495
    %1607 = vmatmul.f32.gmra.mxu0 %v958
    %v1608 = vpop.f32.mrf.mxu0
    %v1609 = vadd.f32 %v1534, %v1608
    %1610 = vmatmul.f32.gmra.mxu0 %v961
    %v1611 = vpop.f32.mrf.mxu0
    %v1612 = vadd.f32 %v1535, %v1611
    %1613 = vdwg.mxu0
    %v1614 = vmul.f32 %v1609, %v1609
    %v1615 = vmul.f32 %v1612, %v1612
    %v1616 = vsel %vm337, %v1614, 0.0
    %1617 = vadd.xlane.f32.xlu0 %v1616
    %v1618 = vpop.xlane.xlu0 %1617
    %v1619 = vsel %vm337, %v1615, 0.0
    %1620 = vadd.xlane.f32.xlu0 %v1619
    %v1621 = vpop.xlane.xlu0 %1620
    %v1622 = vmax.f32 %v1618, 1e-24
    %v1623 = vmax.f32 %v1621, 1e-24
    %v1624 = vrsqrt.pop %v1622
    %v1625 = vmul.f32 %v1624, %v1622
    %v1626 = vmul.f32 %v1625, %v1624
    %v1627 = vmul.f32 0.5, %v1626
    %v1628 = vsub.f32 1.5, %v1627
    %v1629 = vmul.f32 %v1624, %v1628
    %vm1630 = vweird.f32 %v1622
    %vm1631 = vweird.f32 %v1624
    %vm1632 = vmor %vm1630, %vm1631
    %v1633 = vsel %vm1632, %v1624, %v1629
    %v1634 = vrsqrt.pop %v1623
    %v1635 = vmul.f32 %v1634, %v1623
    %v1636 = vmul.f32 %v1635, %v1634
    %v1637 = vmul.f32 0.5, %v1636
    %v1638 = vsub.f32 1.5, %v1637
    %v1639 = vmul.f32 %v1634, %v1638
    %vm1640 = vweird.f32 %v1623
    %vm1641 = vweird.f32 %v1634
    %vm1642 = vmor %vm1640, %vm1641
    %v1643 = vsel %vm1642, %v1634, %v1639
    %v1644 = vmul.f32 %v1609, %v1633
    %v1645 = vmul.f32 %v1612, %v1643
    %v1646 = vld [vmem:[#allocation26] sm:$0xff]
    %v1647 = vld [vmem:[#allocation26 + $0x8] sm:$0xff]
    %v1649 = vsel %vm337, %v1589, 0
    %v1652 = vsel %vm337, %v1590, 0
    %1654 = vmatpush.msra.mxu0 0.0
    %1655 = vmatpush.msra.mxu0 0.0
    %1656 = vmatpush.msra.mxu0 0.0
    %1657 = vmatpush.msra.mxu0 0.0
    %1658 = vmatpush.msra.mxu0 0.0
    %1659 = vmatpush.msra.mxu0 0.0
    %1660 = vmatpush.msra.mxu0 0.0
    %1661 = vmatpush.msra.mxu0 0.0
    %1662 = vmatpush.msra.mxu0 0.0
    %1663 = vmatpush.msra.mxu0 0.0
    %1664 = vmatpush.msra.mxu0 0.0
    %1665 = vmatpush.msra.mxu0 0.0
    %1666 = vmatpush.msra.mxu0 0.0
    %1667 = vmatpush.msra.mxu0 0.0
    %1668 = vmatpush.msra.mxu0 %v1647
    %1669 = vmatpush.msra.mxu0 %v1646
    %1670 = vmatmul.f32.gmra.mxu0 %v1649
    %v1671 = vpop.f32.mrf.mxu0
    %v1672 = vadd.f32 0.0, %v1671
    %1673 = vmatmul.f32.gmra.mxu0 %v1652
    %v1674 = vpop.f32.mrf.mxu0
    %v1675 = vadd.f32 0.0, %v1674
    %1676 = vdwg.mxu0
    %v1678 = vsel %vm337, %v1672, 0
    %v1681 = vsel %vm337, %v1675, 0
    %v1684 = vsel %vm337, %v1644, 0
    %v1687 = vsel %vm337, %v1645, 0
    %1689 = vmatpush.xpose.msra.mxu0 0.0
    %1690 = vmatpush.xpose.msra.mxu0 0.0
    %1691 = vmatpush.xpose.msra.mxu0 0.0
    %1692 = vmatpush.xpose.msra.mxu0 0.0
    %1693 = vmatpush.xpose.msra.mxu0 0.0
    %1694 = vmatpush.xpose.msra.mxu0 0.0
    %1695 = vmatpush.xpose.msra.mxu0 0.0
    %1696 = vmatpush.xpose.msra.mxu0 0.0
    %1697 = vmatpush.xpose.msra.mxu0 0.0
    %1698 = vmatpush.xpose.msra.mxu0 0.0
    %1699 = vmatpush.xpose.msra.mxu0 0.0
    %1700 = vmatpush.xpose.msra.mxu0 0.0
    %1701 = vmatpush.xpose.msra.mxu0 0.0
    %1702 = vmatpush.xpose.msra.mxu0 0.0
    %1703 = vmatpush.xpose.msra.mxu0 %v1687
    %1704 = vmatpush.xpose.msra.mxu0 %v1684
    %1705 = vmatmul.f32.gmra.mxu0 %v1678
    %v1706 = vpop.f32.mrf.mxu0
    %v1707 = vadd.f32 0.0, %v1706
    %1708 = vmatmul.f32.gmra.mxu0 %v1681
    %v1709 = vpop.f32.mrf.mxu0
    %v1710 = vadd.f32 0.0, %v1709
    %1711 = vdwg.mxu0
    %v1712 = vmul.f32 %v1707, %v800
    %v1713 = vmul.f32 %v1710, %v801
    %v1714 = vmul.f32 %v1712, 200.0
    %v1715 = vmul.f32 %v1713, 200.0
    %v1716 = vsel %vm337, %v1714, -inf
    %1717 = vmax.xlane.f32.xlu0 %v1716
    %v1718 = vpop.xlane.xlu0 %1717
    %v1719 = vsel %vm337, %v1715, -inf
    %1720 = vmax.xlane.f32.xlu0 %v1719
    %v1721 = vpop.xlane.xlu0 %1720
    %v1722 = vsub.f32 %v1714, %v1718
    %v1723 = vsub.f32 %v1715, %v1721
    %v1724 = vmul.f32 %v1722, 1.442695
    %v1725 = vpow.pop %v1724
    %v1726 = vmul.f32 %v1723, 1.442695
    %v1727 = vpow.pop %v1726
    %v1728 = vsel %vm337, %v1725, 0.0
    %1729 = vadd.xlane.f32.xlu0 %v1728
    %v1730 = vpop.xlane.xlu0 %1729
    %v1731 = vsel %vm337, %v1727, 0.0
    %1732 = vadd.xlane.f32.xlu0 %v1731
    %v1733 = vpop.xlane.xlu0 %1732
    %v1734 = vrcp.pop %v1730
    %v1735 = vrcp.pop %v1733
    %v1736 = vmul.f32 %v1725, %v1734
    %v1737 = vmul.f32 %v1727, %v1735
    %v1738 = vadd.f32 %v1736, 0.0001
    %v1739 = vadd.f32 %v1737, 0.0001
    %v1740 = vmul.f32 %v1738, %v800
    %v1741 = vmul.f32 %v1739, %v801
    %v1742 = vsel %vm337, %v1740, 0.0
    %v1743 = vsel %vm337, %v1741, 0.0
    %v1744 = vadd.f32 %v1742, %v1743
    %v1745 = vrot.slane %v1744, 4
    %v1746 = vadd.f32 %v1744, %v1745
    %v1747 = vrot.slane %v1746, 2
    %v1748 = vadd.f32 %v1746, %v1747
    %v1749 = vrot.slane %v1748, 1
    %v1750 = vadd.f32 %v1748, %v1749
    %v1751 = vrcp.pop %v1750
    %v1752 = vmul.f32 %v1740, %v1751
    %v1753 = vmul.f32 %v1741, %v1751
    %v1754 = vsel %vm337, %v1752, 0.0
    %1755 = vadd.xlane.f32.xlu0 %v1754
    %v1756 = vpop.xlane.xlu0 %1755
    %v1757 = vsel %vm337, %v1753, 0.0
    %1758 = vadd.xlane.f32.xlu0 %v1757
    %v1759 = vpop.xlane.xlu0 %1758
    %v1760 = vrcp.pop %v1756
    %v1761 = vrcp.pop %v1759
    %v1762 = vmul.f32 %v1752, %v1760
    %v1763 = vmul.f32 %v1753, %v1761
    %v1764 = vsel %vm337, %v1762, 0.0
    %v1765 = vsel %vm337, %v1763, 0.0
    %v1766 = vadd.f32 %v1764, %v1765
    %v1767 = vrot.slane %v1766, 4
    %v1768 = vadd.f32 %v1766, %v1767
    %v1769 = vrot.slane %v1768, 2
    %v1770 = vadd.f32 %v1768, %v1769
    %v1771 = vrot.slane %v1770, 1
    %v1772 = vadd.f32 %v1770, %v1771
    %v1773 = vrcp.pop %v1772
    %v1774 = vmul.f32 %v1762, %v1773
    %v1775 = vmul.f32 %v1763, %v1773
    %v1776 = vsel %vm337, %v1774, 0.0
    %1777 = vadd.xlane.f32.xlu0 %v1776
    %v1778 = vpop.xlane.xlu0 %1777
    %v1779 = vsel %vm337, %v1775, 0.0
    %1780 = vadd.xlane.f32.xlu0 %v1779
    %v1781 = vpop.xlane.xlu0 %1780
    %v1782 = vrcp.pop %v1778
    %v1783 = vrcp.pop %v1781
    %v1784 = vmul.f32 %v1774, %v1782
    %v1785 = vmul.f32 %v1775, %v1783
    %v1786 = vsel %vm337, %v1784, 0.0
    %v1787 = vsel %vm337, %v1785, 0.0
    %v1788 = vadd.f32 %v1786, %v1787
    %v1789 = vrot.slane %v1788, 4
    %v1790 = vadd.f32 %v1788, %v1789
    %v1791 = vrot.slane %v1790, 2
    %v1792 = vadd.f32 %v1790, %v1791
    %v1793 = vrot.slane %v1792, 1
    %v1794 = vadd.f32 %v1792, %v1793
    %v1795 = vrcp.pop %v1794
    %v1796 = vmul.f32 %v1784, %v1795
    %v1797 = vmul.f32 %v1785, %v1795
    %v1798 = vsel %vm337, %v1796, 0.0
    %1799 = vadd.xlane.f32.xlu0 %v1798
    %v1800 = vpop.xlane.xlu0 %1799
    %v1801 = vsel %vm337, %v1797, 0.0
    %1802 = vadd.xlane.f32.xlu0 %v1801
    %v1803 = vpop.xlane.xlu0 %1802
    %v1804 = vrcp.pop %v1800
    %v1805 = vrcp.pop %v1803
    %v1806 = vmul.f32 %v1796, %v1804
    %v1807 = vmul.f32 %v1797, %v1805
    %v1808 = vsel %vm337, %v1806, 0.0
    %v1809 = vsel %vm337, %v1807, 0.0
    %v1810 = vadd.f32 %v1808, %v1809
    %v1811 = vrot.slane %v1810, 4
    %v1812 = vadd.f32 %v1810, %v1811
    %v1813 = vrot.slane %v1812, 2
    %v1814 = vadd.f32 %v1812, %v1813
    %v1815 = vrot.slane %v1814, 1
    %v1816 = vadd.f32 %v1814, %v1815
    %v1817 = vrcp.pop %v1816
    %v1818 = vmul.f32 %v1806, %v1817
    %v1819 = vmul.f32 %v1807, %v1817
    %v1820 = vsel %vm337, %v1818, 0.0
    %1821 = vadd.xlane.f32.xlu0 %v1820
    %v1822 = vpop.xlane.xlu0 %1821
    %v1823 = vsel %vm337, %v1819, 0.0
    %1824 = vadd.xlane.f32.xlu0 %v1823
    %v1825 = vpop.xlane.xlu0 %1824
    %v1826 = vrcp.pop %v1822
    %v1827 = vrcp.pop %v1825
    %v1828 = vmul.f32 %v1818, %v1826
    %v1829 = vmul.f32 %v1819, %v1827
    %v1830 = vsel %vm337, %v1828, 0.0
    %v1831 = vsel %vm337, %v1829, 0.0
    %v1832 = vadd.f32 %v1830, %v1831
    %v1833 = vrot.slane %v1832, 4
    %v1834 = vadd.f32 %v1832, %v1833
    %v1835 = vrot.slane %v1834, 2
    %v1836 = vadd.f32 %v1834, %v1835
    %v1837 = vrot.slane %v1836, 1
    %v1838 = vadd.f32 %v1836, %v1837
    %v1839 = vrcp.pop %v1838
    %v1840 = vmul.f32 %v1828, %v1839
    %v1841 = vmul.f32 %v1829, %v1839
    %v1842 = vsel %vm337, %v1840, 0.0
    %1843 = vadd.xlane.f32.xlu0 %v1842
    %v1844 = vpop.xlane.xlu0 %1843
    %v1845 = vsel %vm337, %v1841, 0.0
    %1846 = vadd.xlane.f32.xlu0 %v1845
    %v1847 = vpop.xlane.xlu0 %1846
    %v1848 = vrcp.pop %v1844
    %v1849 = vrcp.pop %v1847
    %v1850 = vmul.f32 %v1840, %v1848
    %v1851 = vmul.f32 %v1841, %v1849
    %1852 = vst.msk [vmem:[#allocation29] sm:$0xff] %vm337, %v1850
    %1853 = vst.msk [vmem:[#allocation29 + $0x8] sm:$0xff] %vm337, %v1851
    // Predicated region
    $region166: #{net_forward.1} parent=1 // pred_check
      _
    $region167: #{net_forward.1} parent=1 // pred_check_branch
      %1855 = sbr.rel (0) target = $region169
    $region168: #{net_forward.1} parent=1 // pred_region
      %1857 = vsyncadd [#allocation5], 0
      %s1858 = sshll.u32 [#allocation29], 4
      %s1859 = int_to_ptr.vmem [resolvable:$true] %s1858
      %s1860 = sshll.u32 %s25, 4
      %s1861 = int_to_ptr.hbm [resolvable:$true] %s1860
      %1866 = dma.vmem_to_hbm [thread:$0]  %s1859, 256, %s1861, [#allocation5], 128, 128, 8
    $region169: #{net_forward.1} parent=1 // pred_fallthru
      _
    // Predicated region
    $region170: #{net_forward.1} parent=1 // pred_check
      _
    $region171: #{net_forward.1} parent=1 // pred_check_branch
      %1868 = sbr.rel (0) target = $region173
    $region172: #{net_forward.1} parent=1 // pred_region
      %1870 = vsyncadd [#allocation31], 0
      %s1872 = sshll.u32 [#allocation30], 4
      %s1873 = int_to_ptr.vmem [resolvable:$true] %s1872
      %s1874 = sshll.u32 %s26, 4
      %s1875 = int_to_ptr.hbm [resolvable:$true] %s1874
      %1877 = dma.vmem_to_hbm [thread:$0]  %s1873, 128, %s1875, [#allocation31]
    $region173: #{net_forward.1} parent=1 // pred_fallthru
      _
    // Predicated region
    $region174: #{net_forward.1} parent=1 // pred_check
      _
    $region175: #{net_forward.1} parent=1 // pred_check_branch
      %1879 = sbr.rel (0) target = $region177
    $region176: #{net_forward.1} parent=1 // pred_region
      %1881 = vsyncadd [#allocation31], 0
      %s1883 = sshll.u32 [#allocation32], 4
      %s1884 = int_to_ptr.vmem [resolvable:$true] %s1883
      %s1885 = sshll.u32 %s27, 4
      %s1886 = int_to_ptr.hbm [resolvable:$true] %s1885
      %1888 = dma.vmem_to_hbm [thread:$0]  %s1884, 128, %s1886, [#allocation31]
    $region177: #{net_forward.1} parent=1 // pred_fallthru
      _
    // Predicated region
    $region178: #{net_forward.1} parent=1 // pred_check
      _
    $region179: #{net_forward.1} parent=1 // pred_check_branch
      %1890 = sbr.rel (0) target = $region181
    $region180: #{net_forward.1} parent=1 // pred_region
      %1892 = dma.done [#allocation5], 256
    $region181: #{net_forward.1} parent=1 // pred_fallthru
      _
    // Predicated region
    $region182: #{net_forward.1} parent=1 // pred_check
      _
    $region183: #{net_forward.1} parent=1 // pred_check_branch
      %1894 = sbr.rel (0) target = $region185
    $region184: #{net_forward.1} parent=1 // pred_region
      %1896 = dma.done [#allocation31], 128
    $region185: #{net_forward.1} parent=1 // pred_fallthru
      _
    // Predicated region
    $region186: #{net_forward.1} parent=1 // pred_check
      _
    $region187: #{net_forward.1} parent=1 // pred_check_branch
      %1898 = sbr.rel (0) target = $region189
    $region188: #{net_forward.1} parent=1 // pred_region
      %1900 = dma.done [#allocation31], 128
    $region189: #{net_forward.1} parent=1 // pred_fallthru
      _
    %1901 = vsyncpa [#allocation4], 1
    %1902 = vsyncpa [#allocation7], 1
    %1903 = vsyncpa [#allocation10], 1
    %1904 = vsyncpa [#allocation13], 1
    %1905 = vsyncpa [#allocation16], 1
    %1906 = vsyncpa [#allocation19], 1
    %1907 = vsyncpa [#allocation22], 1
    %1908 = vsyncpa [#allocation25], 1
    %1909 = vsyncpa [#allocation28], 1
    %1910 = vsyncpa [#allocation5], 1
    %1911 = vsyncpa [#allocation31], 1

</llo_original>
